<compile_context>
chip_gen: v7x
topology: tpu7x:2x2x1
jax: 0.10.0
libtpu: 0.0.40
codegen_flags: <defaults>
</compile_context>

<pallas_src>
from dataclasses import dataclass
import functools

import jax
import jax.numpy as jnp
from jax import lax
from jax.experimental import pallas as pl
from jax.experimental.pallas import tpu as pltpu


# ----------------------------- config ----------------------------------------
@dataclass(frozen=True)
class Config:
    vocab_size: int = 64
    n_layer: int = 2
    n_head: int = 4
    n_embd: int = 32
    seq_len: int = 16
    num_experts: int = 4
    ep_size: int = 1
    k: int = 1


# ----------------------------- in-kernel helpers ------------------------------
def _layernorm(x, g, b, eps=1e-5):
    mu = jnp.mean(x, axis=-1, keepdims=True)
    var = jnp.mean(jnp.square(x - mu), axis=-1, keepdims=True)
    return (x - mu) * lax.rsqrt(var + eps) * g + b


# --------------------------- fused transformer block ---------------------------
def _block_kernel(x_ref, ln1g_ref, ln1b_ref,
                  wqkv_ref, bqkv_ref,
                  cos_ref, sin_ref,
                  wproj_ref, bproj_ref,
                  ln2g_ref, ln2b_ref,
                  gate_ref,
                  w1_ref, w2_ref, wp_ref,
                  out_ref, gates_ref,
                  h2b_scr, top_scr, idx_scr,
                  *, T, H, hd, E):
    D = H * hd
    e = pl.program_id(1)

    # ---- expert step 0: attention + routing, once per token tile ----
    @pl.when(e == 0)
    def _attention_and_gate():
        x = x_ref[...]                                              # [T, D] f32
        h = _layernorm(x, ln1g_ref[...], ln1b_ref[...])
        qkv = jnp.dot(h.astype(jnp.bfloat16), wqkv_ref[...],
                      preferred_element_type=jnp.float32) + bqkv_ref[...]
        q = qkv[:, 0:D]
        k = qkv[:, D:2 * D]
        v = qkv[:, 2 * D:3 * D]

        # RoPE: interleaved pair rotation via XLU roll + lane-parity select.
        # sin table already carries the (-1, +1) pair sign pattern.
        cos = cos_ref[...]
        sin = sin_ref[...]
        lane = lax.broadcasted_iota(jnp.int32, (T, D), 1)
        even = (lane % 2) == 0

        def rope(u):
            nxt = pltpu.roll(u, D - 1, axis=1)   # nxt[:, j] = u[:, j+1]
            prv = pltpu.roll(u, 1, axis=1)       # prv[:, j] = u[:, j-1]
            swapped = jnp.where(even, nxt, prv)  # pair-swap within (2i, 2i+1)
            return u * cos + swapped * sin

        q = rope(q)
        k = rope(k)

        # causal attention per head (mask / softmax in f32, matmuls in bf16)
        scale = 1.0 / (hd ** 0.5)
        row = lax.broadcasted_iota(jnp.int32, (T, T), 0)
        col = lax.broadcasted_iota(jnp.int32, (T, T), 1)
        causal = row >= col
        heads = []
        for hh in range(H):
            # TODO(synk): at production T, make heads a grid axis / batched
            # contraction instead of an unrolled Python loop.
            cs = slice(hh * hd, (hh + 1) * hd)
            qs = q[:, cs].astype(jnp.bfloat16)
            ks = k[:, cs].astype(jnp.bfloat16)
            vs = v[:, cs].astype(jnp.bfloat16)
            s = lax.dot_general(qs, ks, (((1,), (1,)), ((), ())),
                                preferred_element_type=jnp.float32) * scale
            s = jnp.where(causal, s, -1e30)
            s = s - jnp.max(s, axis=-1, keepdims=True)
            p = jnp.exp(s)
            p = p / jnp.sum(p, axis=-1, keepdims=True)   # exact (no approx recip)
            heads.append(jnp.dot(p.astype(jnp.bfloat16), vs,
                                 preferred_element_type=jnp.float32))
        y = jnp.concatenate(heads, axis=-1)              # [T, D] lane-dense, in vregs

        x1 = x + jnp.dot(y.astype(jnp.bfloat16), wproj_ref[...],
                         preferred_element_type=jnp.float32) + bproj_ref[...]

        # ln_2 + deterministic top-1 softmax gating
        # TODO(synk): DeepSpeed's noisy 'RSample' gating and capacity-factor
        # token dropping are not reproduced; routing is deterministic top-1.
        h2 = _layernorm(x1, ln2g_ref[...], ln2b_ref[...])
        h2b_scr[...] = h2.astype(jnp.bfloat16)

        glog = jnp.dot(h2, gate_ref[...], preferred_element_type=jnp.float32)
        glog = glog - jnp.max(glog, axis=-1, keepdims=True)
        eg = jnp.exp(glog)
        gates = eg / jnp.sum(eg, axis=-1, keepdims=True)          # [T, E] f32
        gates_ref[...] = gates                                    # aux loss in XLA
        top_v = jnp.max(gates, axis=-1, keepdims=True)            # [T, 1]
        eidx = lax.broadcasted_iota(jnp.int32, (T, E), 1)
        first = jnp.min(jnp.where(gates >= top_v, eidx, E),
                        axis=-1, keepdims=True)                   # argmax, ties->lowest
        top_scr[...] = top_v
        idx_scr[...] = first

        out_ref[...] = x1       # init the resident output accumulator (residual)

    # ---- every (tile, expert) step: one streamed expert's SwiGLU ----
    # TODO(synk): dense evaluation of all experts; a group-GEMM with
    # scalar-prefetched group offsets would skip (E-1)/E wasted FLOPs at scale.
    h2b = h2b_scr[...]
    a1 = jnp.dot(h2b, w1_ref[0], preferred_element_type=jnp.float32)   # [T, 4D]
    a2 = jnp.dot(h2b, w2_ref[0], preferred_element_type=jnp.float32)
    act = a1 * (a2 * jax.nn.sigmoid(a2))                                # f32 silu
    oe = jnp.dot(act.astype(jnp.bfloat16), wp_ref[0],
                 preferred_element_type=jnp.float32)                    # [T, D]
    w = jnp.where(idx_scr[...] == e, top_scr[...], 0.0)                 # [T, 1]
    out_ref[...] = out_ref[...] + w * oe


def _resident(shape):
    zeros = (0,) * len(shape)
    return pl.BlockSpec(shape, lambda i, e, _z=zeros: _z)


def block_pallas(x2d, lp, cfg, cos_tab, sin_tab, *, B, T):
    D = cfg.n_embd
    H = cfg.n_head
    hd = D // H
    E = cfg.num_experts
    Hh = 4 * D
    M = B * T
    kernel = functools.partial(_block_kernel, T=T, H=H, hd=hd, E=E)
    bf16 = jnp.bfloat16

    flops = (2 * M * D * 3 * D + 4 * B * H * T * T * hd + 2 * M * D * D
             + 2 * M * D * E + E * (4 * M * D * Hh + 2 * M * Hh * D))
    trans = B * H * T * T + M * E + E * M * Hh
    bytes_acc = (2 * M * D * 4 + M * E * 4 + 2 * T * D * 4
                 + D * 3 * D * 2 + 3 * D * 4 + D * D * 2 + D * 4
                 + 4 * D * 4 + D * E * 4 + 3 * E * D * Hh * 2)

    out_x, gates = pl.pallas_call(
        kernel,
        out_shape=(jax.ShapeDtypeStruct((M, D), jnp.float32),
                   jax.ShapeDtypeStruct((M, E), jnp.float32)),
        grid=(B, E),                                     # token tiles x experts
        in_specs=[
            pl.BlockSpec((T, D), lambda i, e: (i, 0)),           # x (one sequence/tile)
            _resident((1, D)), _resident((1, D)),                # ln_1 g, b
            _resident((D, 3 * D)), _resident((1, 3 * D)),        # c_attn w (bf16), b
            _resident((T, D)), _resident((T, D)),                # rope cos, signed sin
            _resident((D, D)), _resident((1, D)),                # c_proj w (bf16), b
            _resident((1, D)), _resident((1, D)),                # ln_2 g, b
            _resident((D, E)),                                   # gate (f32 for routing)
            pl.BlockSpec((1, D, Hh), lambda i, e: (e, 0, 0)),    # expert w1 (streamed)
            pl.BlockSpec((1, D, Hh), lambda i, e: (e, 0, 0)),    # expert w2 (streamed)
            pl.BlockSpec((1, Hh, D), lambda i, e: (e, 0, 0)),    # expert c_proj (streamed)
        ],
        out_specs=(pl.BlockSpec((T, D), lambda i, e: (i, 0)),
                   pl.BlockSpec((T, E), lambda i, e: (i, 0))),
        scratch_shapes=[pltpu.VMEM((T, D), jnp.bfloat16),        # LN2 output (bf16)
                        pltpu.VMEM((T, 1), jnp.float32),         # top-1 gate value
                        pltpu.VMEM((T, 1), jnp.int32)],          # top-1 expert index
        compiler_params=pltpu.CompilerParams(
            dimension_semantics=("parallel", "arbitrary"),
            vmem_limit_bytes=32 * 1024 * 1024),
        cost_estimate=pl.CostEstimate(flops=flops, transcendentals=trans,
                                      bytes_accessed=bytes_acc),
    )(x2d,
      lp["ln_1"]["g"].reshape(1, D), lp["ln_1"]["b"].reshape(1, D),
      lp["attn"]["c_attn_w"].astype(bf16), lp["attn"]["c_attn_b"].reshape(1, 3 * D),
      cos_tab, sin_tab,
      lp["attn"]["c_proj_w"].astype(bf16), lp["attn"]["c_proj_b"].reshape(1, D),
      lp["ln_2"]["g"].reshape(1, D), lp["ln_2"]["b"].reshape(1, D),
      lp["moe"]["gate_w"],
      lp["moe"]["w1"].astype(bf16), lp["moe"]["w2"].astype(bf16),
      lp["moe"]["wp"].astype(bf16))
    return out_x, gates


# --------------------- fused final layernorm + tied lm_head ---------------------
def _final_kernel(x_ref, g_ref, b_ref, wteT_ref, logits_ref):
    h = _layernorm(x_ref[...], g_ref[...], b_ref[...])
    logits_ref[...] = jnp.dot(h.astype(jnp.bfloat16), wteT_ref[...],
                              preferred_element_type=jnp.float32)


def final_pallas(x2d, lnf, wte, *, B, T):
    M, D = x2d.shape
    V = wte.shape[0]
    wteT = wte.T.astype(jnp.bfloat16)   # one-time [D, V] copy -> lane-dense logits
    # TODO(synk): at production vocab sizes, add a V grid axis (128-multiples)
    # instead of keeping the whole [D, V] block and [tm, V] logits resident.
    return pl.pallas_call(
        _final_kernel,
        out_shape=jax.ShapeDtypeStruct((M, V), jnp.float32),
        grid=(B,),
        in_specs=[pl.BlockSpec((T, D), lambda i: (i, 0)),
                  pl.BlockSpec((1, D), lambda i: (0, 0)),
                  pl.BlockSpec((1, D), lambda i: (0, 0)),
                  pl.BlockSpec((D, V), lambda i: (0, 0))],
        out_specs=pl.BlockSpec((T, V), lambda i: (i, 0)),
        compiler_params=pltpu.CompilerParams(
            dimension_semantics=("parallel",),
            vmem_limit_bytes=32 * 1024 * 1024),
    )(x2d, lnf["g"].reshape(1, D), lnf["b"].reshape(1, D), wteT)


# ------------------------------ params ----------------------------------------
def init_params(key, cfg: Config):
    D, V, E = cfg.n_embd, cfg.vocab_size, cfg.num_experts
    H = 4 * D
    std = 0.02
    proj_std = std * (2 * cfg.n_layer) ** -0.5      # NANOGPT_SCALE_INIT
    keys = iter(jax.random.split(key, 4 + cfg.n_layer * 8))

    def nrm(shape, s):
        return s * jax.random.normal(next(keys), shape, jnp.float32)

    params = {
        "wte": nrm((V, D), std),                    # embedding, tied with lm_head
        "ln_f": {"g": jnp.ones((D,), jnp.float32), "b": jnp.zeros((D,), jnp.float32)},
        "layers": [],
    }
    for _ in range(cfg.n_layer):
        params["layers"].append({
            "ln_1": {"g": jnp.ones((D,), jnp.float32), "b": jnp.zeros((D,), jnp.float32)},
            "attn": {
                "c_attn_w": nrm((D, 3 * D), std),
                "c_attn_b": jnp.zeros((3 * D,), jnp.float32),
                "c_proj_w": nrm((D, D), proj_std),
                "c_proj_b": jnp.zeros((D,), jnp.float32),
            },
            "ln_2": {"g": jnp.ones((D,), jnp.float32), "b": jnp.zeros((D,), jnp.float32)},
            "moe": {
                "gate_w": nrm((D, E), std),
                "w1": nrm((E, D, H), std),
                "w2": nrm((E, D, H), std),
                "wp": nrm((E, H, D), std),
            },
        })
    return params


# ------------------------------ rope tables ------------------------------------
def rope_tables(cfg: Config, T):
    """[T, D] cos table and pair-sign-folded sin table (shared by all layers)."""
    D = cfg.n_embd
    H = cfg.n_head
    hd = D // H
    theta = 10000.0 ** (-jnp.arange(0, hd, 2, dtype=jnp.float32) / hd)   # [hd//2]
    pos = jnp.arange(T, dtype=jnp.float32)
    ang = jnp.outer(pos, theta)                                          # [T, hd//2]
    cos_hd = jnp.repeat(jnp.cos(ang), 2, axis=-1)                        # [T, hd]
    sin_hd = jnp.repeat(jnp.sin(ang), 2, axis=-1)
    sign = jnp.tile(jnp.array([-1.0, 1.0], jnp.float32), hd // 2)        # -sin even, +sin odd
    cos_tab = jnp.tile(cos_hd, (1, H))                                   # [T, D]
    sin_tab = jnp.tile(sin_hd * sign, (1, H))
    return cos_tab, sin_tab


# ------------------------------ forward ----------------------------------------
def model_forward(params, idx, targets, *, cfg: Config):
    B, T = idx.shape
    assert T <= cfg.seq_len
    D = cfg.n_embd
    E = cfg.num_experts
    M = B * T
    x = params["wte"][idx].reshape(M, D)                     # embedding gather (XLA)
    cos_tab, sin_tab = rope_tables(cfg, T)

    # TODO(synk): layer loop could prefetch next-layer weights via cross-call
    # DMA futures / scanned stacked params at production depth.
    aux_total = jnp.float32(0.0)
    for lp in params["layers"]:
        x, gates = block_pallas(x, lp, cfg, cos_tab, sin_tab, B=B, T=T)
        sel = jnp.argmax(gates, axis=-1)
        mask1 = jax.nn.one_hot(sel, E, dtype=jnp.float32)
        aux_total = aux_total + float(E) * jnp.sum(
            jnp.mean(gates, axis=0) * jnp.mean(mask1, axis=0))

    logits = final_pallas(x, params["ln_f"], params["wte"],
                          B=B, T=T).reshape(B, T, cfg.vocab_size)

    total_loss = None
    if targets is not None:
        logp = jax.nn.log_softmax(logits.reshape(-1, cfg.vocab_size), axis=-1)
        nll = -jnp.take_along_axis(logp, targets.reshape(-1, 1), axis=-1)[:, 0]
        total_loss = jnp.mean(nll) + 0.01 * aux_total
    return logits, total_loss


# ------------------------------- main ------------------------------------------
if __name__ == "__main__":
    cfg = Config()
    key = jax.random.PRNGKey(0)
    kp, ki, kt = jax.random.split(key, 3)
    params = init_params(kp, cfg)

    B, T = 2, 8
    idx = jax.random.randint(ki, (B, T), 0, cfg.vocab_size, dtype=jnp.int32)
    targets = jax.random.randint(kt, (B, T), 0, cfg.vocab_size, dtype=jnp.int32)

    fwd = jax.jit(functools.partial(model_forward, cfg=cfg))
    logits, total_loss = fwd(params, idx, targets)
    jax.block_until_ready((logits, total_loss))

    assert logits.shape == (B, T, cfg.vocab_size)
    assert bool(jnp.isfinite(total_loss))
    print("KERNEL_OK")
</pallas_src>

<mosaic_0001>
module attributes {stable_mosaic.version = 11 : i64} {
  func.func @_final_kernel(%arg0: i32, %arg1: memref<8x32xf32, #tpu.memory_space<vmem>>, %arg2: memref<1x32xf32, #tpu.memory_space<vmem>>, %arg3: memref<1x32xf32, #tpu.memory_space<vmem>>, %arg4: memref<32x64xbf16, #tpu.memory_space<vmem>>, %arg5: memref<8x64xf32, #tpu.memory_space<vmem>>) attributes {dimension_semantics = [#tpu.dimension_semantics<parallel>], iteration_bounds = array<i64: 2>, scalar_prefetch = 0 : i64, scratch_operands = 0 : i64, tpu.core_type = #tpu.core_type<tc>, window_params = [{transform_indices = @transform_0, window_bounds = array<i64: 8, 32>}, {pipeline_mode = #tpu.pipeline_mode<synchronous>, transform_indices = @transform_1, window_bounds = array<i64: 1, 32>}, {pipeline_mode = #tpu.pipeline_mode<synchronous>, transform_indices = @transform_2, window_bounds = array<i64: 1, 32>}, {pipeline_mode = #tpu.pipeline_mode<synchronous>, transform_indices = @transform_3, window_bounds = array<i64: 32, 64>}, {transform_indices = @transform_4, window_bounds = array<i64: 8, 64>}]} {
    %c0 = arith.constant 0 : index
    %c0_0 = arith.constant 0 : index
    %0 = vector.load %arg1[%c0, %c0_0] : memref<8x32xf32, #tpu.memory_space<vmem>>, vector<8x32xf32>
    %c0_1 = arith.constant 0 : index
    %c0_2 = arith.constant 0 : index
    %1 = vector.load %arg2[%c0_1, %c0_2] : memref<1x32xf32, #tpu.memory_space<vmem>>, vector<1x32xf32>
    %c0_3 = arith.constant 0 : index
    %c0_4 = arith.constant 0 : index
    %2 = vector.load %arg3[%c0_3, %c0_4] : memref<1x32xf32, #tpu.memory_space<vmem>>, vector<1x32xf32>
    %cst = arith.constant dense<0.000000e+00> : vector<8xf32>
    %3 = vector.multi_reduction <add>, %0, %cst [1] : vector<8x32xf32> to vector<8xf32>
    %4 = vector.shape_cast %3 : vector<8xf32> to vector<8x1xf32>
    %cst_5 = arith.constant 3.200000e+01 : f32
    %5 = vector.broadcast %cst_5 : f32 to vector<8x1xf32>
    %6 = arith.divf %4, %5 : vector<8x1xf32>
    %7 = vector.broadcast %6 : vector<8x1xf32> to vector<8x32xf32>
    %8 = arith.subf %0, %7 : vector<8x32xf32>
    %9 = arith.mulf %8, %8 : vector<8x32xf32>
    %cst_6 = arith.constant dense<0.000000e+00> : vector<8xf32>
    %10 = vector.multi_reduction <add>, %9, %cst_6 [1] : vector<8x32xf32> to vector<8xf32>
    %11 = vector.shape_cast %10 : vector<8xf32> to vector<8x1xf32>
    %cst_7 = arith.constant 3.200000e+01 : f32
    %12 = vector.broadcast %cst_7 : f32 to vector<8x1xf32>
    %13 = arith.divf %11, %12 : vector<8x1xf32>
    %14 = vector.broadcast %6 : vector<8x1xf32> to vector<8x32xf32>
    %15 = arith.subf %0, %14 : vector<8x32xf32>
    %cst_8 = arith.constant 9.99999974E-6 : f32
    %16 = vector.broadcast %cst_8 : f32 to vector<8x1xf32>
    %17 = arith.addf %13, %16 : vector<8x1xf32>
    %18 = math.rsqrt %17 : vector<8x1xf32>
    %19 = vector.broadcast %18 : vector<8x1xf32> to vector<8x32xf32>
    %20 = arith.mulf %15, %19 : vector<8x32xf32>
    %21 = vector.broadcast %1 : vector<1x32xf32> to vector<8x32xf32>
    %22 = arith.mulf %20, %21 : vector<8x32xf32>
    %23 = vector.broadcast %2 : vector<1x32xf32> to vector<8x32xf32>
    %24 = arith.addf %22, %23 : vector<8x32xf32>
    %25 = arith.truncf %24 : vector<8x32xf32> to vector<8x32xbf16>
    %c0_9 = arith.constant 0 : index
    %c0_10 = arith.constant 0 : index
    %26 = vector.load %arg4[%c0_9, %c0_10] : memref<32x64xbf16, #tpu.memory_space<vmem>>, vector<32x64xbf16>
    %cst_11 = arith.constant dense<0.000000e+00> : vector<8x64xf32>
    %27 = tpu.matmul %25, %26, %cst_11 {dimension_numbers = #tpu.dot_dimension_numbers<[1], [0], [0], [1], [0, 0, 1, 1], [], []>} : vector<8x32xbf16>, vector<32x64xbf16>, vector<8x64xf32> -> vector<8x64xf32>
    %c0_12 = arith.constant 0 : index
    %c0_13 = arith.constant 0 : index
    %28 = vector.load %arg5[%c0_12, %c0_13] : memref<8x64xf32, #tpu.memory_space<vmem>>, vector<8x64xf32>
    tpu.vector_store %arg5[%c0_12, %c0_13], %27 {strides = array<i32>} : memref<8x64xf32, #tpu.memory_space<vmem>>, vector<8x64xf32>,
    return
  }
  func.func @transform_0(%arg0: i32) -> (i32, i32) {
    %c0_i32 = arith.constant 0 : i32
    %c0_i32_0 = arith.constant 0 : i32
    return %arg0, %c0_i32 : i32, i32
  }
  func.func @transform_1(%arg0: i32) -> (i32, i32) {
    %c0_i32 = arith.constant 0 : i32
    %c0_i32_0 = arith.constant 0 : i32
    %c0_i32_1 = arith.constant 0 : i32
    return %c0_i32, %c0_i32_0 : i32, i32
  }
  func.func @transform_2(%arg0: i32) -> (i32, i32) {
    %c0_i32 = arith.constant 0 : i32
    %c0_i32_0 = arith.constant 0 : i32
    %c0_i32_1 = arith.constant 0 : i32
    return %c0_i32, %c0_i32_0 : i32, i32
  }
  func.func @transform_3(%arg0: i32) -> (i32, i32) {
    %c0_i32 = arith.constant 0 : i32
    %c0_i32_0 = arith.constant 0 : i32
    %c0_i32_1 = arith.constant 0 : i32
    return %c0_i32, %c0_i32_0 : i32, i32
  }
  func.func @transform_4(%arg0: i32) -> (i32, i32) {
    %c0_i32 = arith.constant 0 : i32
    %c0_i32_0 = arith.constant 0 : i32
    return %arg0, %c0_i32 : i32, i32
  }
}

module attributes {stable_mosaic.version = 11 : i64} {
  func.func @_block_kernel(%arg0: i32, %arg1: i32, %arg2: memref<8x32xf32, #tpu.memory_space<vmem>>, %arg3: memref<1x32xf32, #tpu.memory_space<vmem>>, %arg4: memref<1x32xf32, #tpu.memory_space<vmem>>, %arg5: memref<32x96xbf16, #tpu.memory_space<vmem>>, %arg6: memref<1x96xf32, #tpu.memory_space<vmem>>, %arg7: memref<8x32xf32, #tpu.memory_space<vmem>>, %arg8: memref<8x32xf32, #tpu.memory_space<vmem>>, %arg9: memref<32x32xbf16, #tpu.memory_space<vmem>>, %arg10: memref<1x32xf32, #tpu.memory_space<vmem>>, %arg11: memref<1x32xf32, #tpu.memory_space<vmem>>, %arg12: memref<1x32xf32, #tpu.memory_space<vmem>>, %arg13: memref<32x4xf32, #tpu.memory_space<vmem>>, %arg14: memref<1x32x128xbf16, #tpu.memory_space<vmem>>, %arg15: memref<1x32x128xbf16, #tpu.memory_space<vmem>>, %arg16: memref<1x128x32xbf16, #tpu.memory_space<vmem>>, %arg17: memref<8x32xf32, #tpu.memory_space<vmem>>, %arg18: memref<8x4xf32, #tpu.memory_space<vmem>>, %arg19: memref<8x32xbf16, #tpu.memory_space<vmem>>, %arg20: memref<8x1xf32, #tpu.memory_space<vmem>>, %arg21: memref<8x1xi32, #tpu.memory_space<vmem>>) attributes {dimension_semantics = [#tpu.dimension_semantics<parallel>, #tpu.dimension_semantics<arbitrary>], iteration_bounds = array<i64: 2, 4>, scalar_prefetch = 0 : i64, scratch_operands = 3 : i64, tpu.core_type = #tpu.core_type<tc>, window_params = [{transform_indices = @transform_0, window_bounds = array<i64: 8, 32>}, {pipeline_mode = #tpu.pipeline_mode<synchronous>, transform_indices = @transform_1, window_bounds = array<i64: 1, 32>}, {pipeline_mode = #tpu.pipeline_mode<synchronous>, transform_indices = @transform_2, window_bounds = array<i64: 1, 32>}, {pipeline_mode = #tpu.pipeline_mode<synchronous>, transform_indices = @transform_3, window_bounds = array<i64: 32, 96>}, {pipeline_mode = #tpu.pipeline_mode<synchronous>, transform_indices = @transform_4, window_bounds = array<i64: 1, 96>}, {pipeline_mode = #tpu.pipeline_mode<synchronous>, transform_indices = @transform_5, window_bounds = array<i64: 8, 32>}, {pipeline_mode = #tpu.pipeline_mode<synchronous>, transform_indices = @transform_6, window_bounds = array<i64: 8, 32>}, {pipeline_mode = #tpu.pipeline_mode<synchronous>, transform_indices = @transform_7, window_bounds = array<i64: 32, 32>}, {pipeline_mode = #tpu.pipeline_mode<synchronous>, transform_indices = @transform_8, window_bounds = array<i64: 1, 32>}, {pipeline_mode = #tpu.pipeline_mode<synchronous>, transform_indices = @transform_9, window_bounds = array<i64: 1, 32>}, {pipeline_mode = #tpu.pipeline_mode<synchronous>, transform_indices = @transform_10, window_bounds = array<i64: 1, 32>}, {pipeline_mode = #tpu.pipeline_mode<synchronous>, transform_indices = @transform_11, window_bounds = array<i64: 32, 4>}, {transform_indices = @transform_12, window_bounds = array<i64: 1, 32, 128>}, {transform_indices = @transform_13, window_bounds = array<i64: 1, 32, 128>}, {transform_indices = @transform_14, window_bounds = array<i64: 1, 128, 32>}, {transform_indices = @transform_15, window_bounds = array<i64: 8, 32>}, {transform_indices = @transform_16, window_bounds = array<i64: 8, 4>}]} {
    %c0_i32 = arith.constant 0 : i32
    %0 = arith.cmpi eq, %arg1, %c0_i32 : i32
    %1 = arith.extui %0 : i1 to i32
    %c0_i32_0 = arith.constant 0 : i32
    %2 = arith.cmpi ne, %1, %c0_i32_0 : i32
    scf.if %2 {
      %c0_23 = arith.constant 0 : index
      %c0_24 = arith.constant 0 : index
      %32 = vector.load %arg2[%c0_23, %c0_24] : memref<8x32xf32, #tpu.memory_space<vmem>>, vector<8x32xf32>
      %c0_25 = arith.constant 0 : index
      %c0_26 = arith.constant 0 : index
      %33 = vector.load %arg3[%c0_25, %c0_26] : memref<1x32xf32, #tpu.memory_space<vmem>>, vector<1x32xf32>
      %c0_27 = arith.constant 0 : index
      %c0_28 = arith.constant 0 : index
      %34 = vector.load %arg4[%c0_27, %c0_28] : memref<1x32xf32, #tpu.memory_space<vmem>>, vector<1x32xf32>
      %cst_29 = arith.constant dense<0.000000e+00> : vector<8xf32>
      %35 = vector.multi_reduction <add>, %32, %cst_29 [1] : vector<8x32xf32> to vector<8xf32>
      %36 = vector.shape_cast %35 : vector<8xf32> to vector<8x1xf32>
      %cst_30 = arith.constant 3.200000e+01 : f32
      %37 = vector.broadcast %cst_30 : f32 to vector<8x1xf32>
      %38 = arith.divf %36, %37 : vector<8x1xf32>
      %39 = vector.broadcast %38 : vector<8x1xf32> to vector<8x32xf32>
      %40 = arith.subf %32, %39 : vector<8x32xf32>
      %41 = arith.mulf %40, %40 : vector<8x32xf32>
      %cst_31 = arith.constant dense<0.000000e+00> : vector<8xf32>
      %42 = vector.multi_reduction <add>, %41, %cst_31 [1] : vector<8x32xf32> to vector<8xf32>
      %43 = vector.shape_cast %42 : vector<8xf32> to vector<8x1xf32>
      %cst_32 = arith.constant 3.200000e+01 : f32
      %44 = vector.broadcast %cst_32 : f32 to vector<8x1xf32>
      %45 = arith.divf %43, %44 : vector<8x1xf32>
      %46 = vector.broadcast %38 : vector<8x1xf32> to vector<8x32xf32>
      %47 = arith.subf %32, %46 : vector<8x32xf32>
      %cst_33 = arith.constant 9.99999974E-6 : f32
      %48 = vector.broadcast %cst_33 : f32 to vector<8x1xf32>
      %49 = arith.addf %45, %48 : vector<8x1xf32>
      %50 = math.rsqrt %49 : vector<8x1xf32>
      %51 = vector.broadcast %50 : vector<8x1xf32> to vector<8x32xf32>
      %52 = arith.mulf %47, %51 : vector<8x32xf32>
      %53 = vector.broadcast %33 : vector<1x32xf32> to vector<8x32xf32>
      %54 = arith.mulf %52, %53 : vector<8x32xf32>
      %55 = vector.broadcast %34 : vector<1x32xf32> to vector<8x32xf32>
      %56 = arith.addf %54, %55 : vector<8x32xf32>
      %57 = arith.truncf %56 : vector<8x32xf32> to vector<8x32xbf16>
      %c0_34 = arith.constant 0 : index
      %c0_35 = arith.constant 0 : index
      %58 = vector.load %arg5[%c0_34, %c0_35] : memref<32x96xbf16, #tpu.memory_space<vmem>>, vector<32x96xbf16>
      %cst_36 = arith.constant dense<0.000000e+00> : vector<8x96xf32>
      %59 = tpu.matmul %57, %58, %cst_36 {dimension_numbers = #tpu.dot_dimension_numbers<[1], [0], [0], [1], [0, 0, 1, 1], [], []>} : vector<8x32xbf16>, vector<32x96xbf16>, vector<8x96xf32> -> vector<8x96xf32>
      %c0_37 = arith.constant 0 : index
      %c0_38 = arith.constant 0 : index
      %60 = vector.load %arg6[%c0_37, %c0_38] : memref<1x96xf32, #tpu.memory_space<vmem>>, vector<1x96xf32>
      %61 = vector.broadcast %60 : vector<1x96xf32> to vector<8x96xf32>
      %62 = arith.addf %59, %61 : vector<8x96xf32>
      %63 = vector.extract_strided_slice %62 {offsets = [0, 0], sizes = [8, 32], strides = [1, 1]} : vector<8x96xf32> to vector<8x32xf32>
      %64 = vector.extract_strided_slice %62 {offsets = [0, 32], sizes = [8, 32], strides = [1, 1]} : vector<8x96xf32> to vector<8x32xf32>
      %65 = vector.extract_strided_slice %62 {offsets = [0, 64], sizes = [8, 32], strides = [1, 1]} : vector<8x96xf32> to vector<8x32xf32>
      %c0_39 = arith.constant 0 : index
      %c0_40 = arith.constant 0 : index
      %66 = vector.load %arg7[%c0_39, %c0_40] : memref<8x32xf32, #tpu.memory_space<vmem>>, vector<8x32xf32>
      %c0_41 = arith.constant 0 : index
      %c0_42 = arith.constant 0 : index
      %67 = vector.load %arg8[%c0_41, %c0_42] : memref<8x32xf32, #tpu.memory_space<vmem>>, vector<8x32xf32>
      %68 = tpu.iota {dimensions = array<i32: 1>} : vector<8x32xi32>
      %c2_i32 = arith.constant 2 : i32
      %c0_i32_43 = arith.constant 0 : i32
      %69 = arith.cmpi eq, %c2_i32, %c0_i32_43 : i32
      %c1_i32 = arith.constant 1 : i32
      %70 = arith.select %69, %c1_i32, %c2_i32 : i32
      %71 = vector.broadcast %70 : i32 to vector<8x32xi32>
      %72 = arith.remsi %68, %71 : vector<8x32xi32>
      %c0_i32_44 = arith.constant 0 : i32
      %73 = vector.broadcast %c0_i32_44 : i32 to vector<8x32xi32>
      %74 = arith.cmpi ne, %72, %73 : vector<8x32xi32>
      %c0_i32_45 = arith.constant 0 : i32
      %75 = vector.broadcast %c0_i32_45 : i32 to vector<8x32xi32>
      %76 = arith.cmpi slt, %72, %75 : vector<8x32xi32>
      %c0_i32_46 = arith.constant 0 : i32
      %77 = arith.cmpi slt, %70, %c0_i32_46 : i32
      %78 = vector.broadcast %77 : i1 to vector<8x32xi1>
      %79 = vector.broadcast %78 : vector<8x32xi1> to vector<8x32xi1>
      %80 = arith.xori %76, %79 : vector<8x32xi1>
      %81 = arith.andi %80, %74 : vector<8x32xi1>
      %82 = vector.broadcast %70 : i32 to vector<8x32xi32>
      %83 = arith.addi %72, %82 : vector<8x32xi32>
      %84 = arith.select %81, %83, %72 : vector<8x32xi1>, vector<8x32xi32>
      %c0_i32_47 = arith.constant 0 : i32
      %85 = vector.broadcast %c0_i32_47 : i32 to vector<8x32xi32>
      %86 = arith.cmpi eq, %84, %85 : vector<8x32xi32>
      %c31_i32 = arith.constant 31 : i32
      %87 = tpu.dynamic_rotate %63 by %c31_i32 dim 1 : vector<8x32xf32>, i32 -> vector<8x32xf32>
      %c1_i32_48 = arith.constant 1 : i32
      %88 = tpu.dynamic_rotate %63 by %c1_i32_48 dim 1 : vector<8x32xf32>, i32 -> vector<8x32xf32>
      %89 = arith.select %86, %87, %88 : vector<8x32xi1>, vector<8x32xf32>
      %90 = arith.mulf %63, %66 : vector<8x32xf32>
      %91 = arith.mulf %89, %67 : vector<8x32xf32>
      %92 = arith.addf %90, %91 : vector<8x32xf32>
      %c31_i32_49 = arith.constant 31 : i32
      %93 = tpu.dynamic_rotate %64 by %c31_i32_49 dim 1 : vector<8x32xf32>, i32 -> vector<8x32xf32>
      %c1_i32_50 = arith.constant 1 : i32
      %94 = tpu.dynamic_rotate %64 by %c1_i32_50 dim 1 : vector<8x32xf32>, i32 -> vector<8x32xf32>
      %95 = arith.select %86, %93, %94 : vector<8x32xi1>, vector<8x32xf32>
      %96 = arith.mulf %64, %66 : vector<8x32xf32>
      %97 = arith.mulf %95, %67 : vector<8x32xf32>
      %98 = arith.addf %96, %97 : vector<8x32xf32>
      %99 = tpu.iota {dimensions = array<i32: 0>} : vector<8x8xi32>
      %100 = tpu.iota {dimensions = array<i32: 1>} : vector<8x8xi32>
      %101 = arith.cmpi sge, %99, %100 : vector<8x8xi32>
      %102 = vector.extract_strided_slice %92 {offsets = [0, 0], sizes = [8, 8], strides = [1, 1]} : vector<8x32xf32> to vector<8x8xf32>
      %103 = arith.truncf %102 : vector<8x8xf32> to vector<8x8xbf16>
      %104 = vector.extract_strided_slice %98 {offsets = [0, 0], sizes = [8, 8], strides = [1, 1]} : vector<8x32xf32> to vector<8x8xf32>
      %105 = arith.truncf %104 : vector<8x8xf32> to vector<8x8xbf16>
      %106 = vector.extract_strided_slice %65 {offsets = [0, 0], sizes = [8, 8], strides = [1, 1]} : vector<8x32xf32> to vector<8x8xf32>
      %107 = arith.truncf %106 : vector<8x8xf32> to vector<8x8xbf16>
      %cst_51 = arith.constant dense<0.000000e+00> : vector<8x8xf32>
      %108 = tpu.matmul %103, %105, %cst_51 {dimension_numbers = #tpu.dot_dimension_numbers<[1], [1], [0], [0], [0, 0, 1, 0], [], []>} : vector<8x8xbf16>, vector<8x8xbf16>, vector<8x8xf32> -> vector<8x8xf32>
      %cst_52 = arith.constant 0.353553385 : f32
      %109 = vector.broadcast %cst_52 : f32 to vector<8x8xf32>
      %110 = arith.mulf %108, %109 : vector<8x8xf32>
      %cst_53 = arith.constant -1.000000e+30 : f32
      %111 = vector.broadcast %cst_53 : f32 to vector<8x8xf32>
      %112 = arith.select %101, %110, %111 : vector<8x8xi1>, vector<8x8xf32>
      %cst_54 = arith.constant dense<0xFF800000> : vector<8xf32>
      %113 = vector.multi_reduction <maximumf>, %112, %cst_54 [1] : vector<8x8xf32> to vector<8xf32>
      %114 = vector.shape_cast %113 : vector<8xf32> to vector<8x1xf32>
      %115 = vector.broadcast %114 : vector<8x1xf32> to vector<8x8xf32>
      %116 = arith.subf %112, %115 : vector<8x8xf32>
      %117 = math.exp %116 : vector<8x8xf32>
      %cst_55 = arith.constant dense<0.000000e+00> : vector<8xf32>
      %118 = vector.multi_reduction <add>, %117, %cst_55 [1] : vector<8x8xf32> to vector<8xf32>
      %119 = vector.shape_cast %118 : vector<8xf32> to vector<8x1xf32>
      %120 = vector.broadcast %119 : vector<8x1xf32> to vector<8x8xf32>
      %121 = arith.divf %117, %120 : vector<8x8xf32>
      %122 = arith.truncf %121 : vector<8x8xf32> to vector<8x8xbf16>
      %cst_56 = arith.constant dense<0.000000e+00> : vector<8x8xf32>
      %123 = tpu.matmul %122, %107, %cst_56 {dimension_numbers = #tpu.dot_dimension_numbers<[1], [0], [0], [1], [0, 0, 1, 1], [], []>} : vector<8x8xbf16>, vector<8x8xbf16>, vector<8x8xf32> -> vector<8x8xf32>
      %124 = vector.extract_strided_slice %92 {offsets = [0, 8], sizes = [8, 8], strides = [1, 1]} : vector<8x32xf32> to vector<8x8xf32>
      %125 = arith.truncf %124 : vector<8x8xf32> to vector<8x8xbf16>
      %126 = vector.extract_strided_slice %98 {offsets = [0, 8], sizes = [8, 8], strides = [1, 1]} : vector<8x32xf32> to vector<8x8xf32>
      %127 = arith.truncf %126 : vector<8x8xf32> to vector<8x8xbf16>
      %128 = vector.extract_strided_slice %65 {offsets = [0, 8], sizes = [8, 8], strides = [1, 1]} : vector<8x32xf32> to vector<8x8xf32>
      %129 = arith.truncf %128 : vector<8x8xf32> to vector<8x8xbf16>
      %cst_57 = arith.constant dense<0.000000e+00> : vector<8x8xf32>
      %130 = tpu.matmul %125, %127, %cst_57 {dimension_numbers = #tpu.dot_dimension_numbers<[1], [1], [0], [0], [0, 0, 1, 0], [], []>} : vector<8x8xbf16>, vector<8x8xbf16>, vector<8x8xf32> -> vector<8x8xf32>
      %cst_58 = arith.constant 0.353553385 : f32
      %131 = vector.broadcast %cst_58 : f32 to vector<8x8xf32>
      %132 = arith.mulf %130, %131 : vector<8x8xf32>
      %cst_59 = arith.constant -1.000000e+30 : f32
      %133 = vector.broadcast %cst_59 : f32 to vector<8x8xf32>
      %134 = arith.select %101, %132, %133 : vector<8x8xi1>, vector<8x8xf32>
      %cst_60 = arith.constant dense<0xFF800000> : vector<8xf32>
      %135 = vector.multi_reduction <maximumf>, %134, %cst_60 [1] : vector<8x8xf32> to vector<8xf32>
      %136 = vector.shape_cast %135 : vector<8xf32> to vector<8x1xf32>
      %137 = vector.broadcast %136 : vector<8x1xf32> to vector<8x8xf32>
      %138 = arith.subf %134, %137 : vector<8x8xf32>
      %139 = math.exp %138 : vector<8x8xf32>
      %cst_61 = arith.constant dense<0.000000e+00> : vector<8xf32>
      %140 = vector.multi_reduction <add>, %139, %cst_61 [1] : vector<8x8xf32> to vector<8xf32>
      %141 = vector.shape_cast %140 : vector<8xf32> to vector<8x1xf32>
      %142 = vector.broadcast %141 : vector<8x1xf32> to vector<8x8xf32>
      %143 = arith.divf %139, %142 : vector<8x8xf32>
      %144 = arith.truncf %143 : vector<8x8xf32> to vector<8x8xbf16>
      %cst_62 = arith.constant dense<0.000000e+00> : vector<8x8xf32>
      %145 = tpu.matmul %144, %129, %cst_62 {dimension_numbers = #tpu.dot_dimension_numbers<[1], [0], [0], [1], [0, 0, 1, 1], [], []>} : vector<8x8xbf16>, vector<8x8xbf16>, vector<8x8xf32> -> vector<8x8xf32>
      %146 = vector.extract_strided_slice %92 {offsets = [0, 16], sizes = [8, 8], strides = [1, 1]} : vector<8x32xf32> to vector<8x8xf32>
      %147 = arith.truncf %146 : vector<8x8xf32> to vector<8x8xbf16>
      %148 = vector.extract_strided_slice %98 {offsets = [0, 16], sizes = [8, 8], strides = [1, 1]} : vector<8x32xf32> to vector<8x8xf32>
      %149 = arith.truncf %148 : vector<8x8xf32> to vector<8x8xbf16>
      %150 = vector.extract_strided_slice %65 {offsets = [0, 16], sizes = [8, 8], strides = [1, 1]} : vector<8x32xf32> to vector<8x8xf32>
      %151 = arith.truncf %150 : vector<8x8xf32> to vector<8x8xbf16>
      %cst_63 = arith.constant dense<0.000000e+00> : vector<8x8xf32>
      %152 = tpu.matmul %147, %149, %cst_63 {dimension_numbers = #tpu.dot_dimension_numbers<[1], [1], [0], [0], [0, 0, 1, 0], [], []>} : vector<8x8xbf16>, vector<8x8xbf16>, vector<8x8xf32> -> vector<8x8xf32>
      %cst_64 = arith.constant 0.353553385 : f32
      %153 = vector.broadcast %cst_64 : f32 to vector<8x8xf32>
      %154 = arith.mulf %152, %153 : vector<8x8xf32>
      %cst_65 = arith.constant -1.000000e+30 : f32
      %155 = vector.broadcast %cst_65 : f32 to vector<8x8xf32>
      %156 = arith.select %101, %154, %155 : vector<8x8xi1>, vector<8x8xf32>
      %cst_66 = arith.constant dense<0xFF800000> : vector<8xf32>
      %157 = vector.multi_reduction <maximumf>, %156, %cst_66 [1] : vector<8x8xf32> to vector<8xf32>
      %158 = vector.shape_cast %157 : vector<8xf32> to vector<8x1xf32>
      %159 = vector.broadcast %158 : vector<8x1xf32> to vector<8x8xf32>
      %160 = arith.subf %156, %159 : vector<8x8xf32>
      %161 = math.exp %160 : vector<8x8xf32>
      %cst_67 = arith.constant dense<0.000000e+00> : vector<8xf32>
      %162 = vector.multi_reduction <add>, %161, %cst_67 [1] : vector<8x8xf32> to vector<8xf32>
      %163 = vector.shape_cast %162 : vector<8xf32> to vector<8x1xf32>
      %164 = vector.broadcast %163 : vector<8x1xf32> to vector<8x8xf32>
      %165 = arith.divf %161, %164 : vector<8x8xf32>
      %166 = arith.truncf %165 : vector<8x8xf32> to vector<8x8xbf16>
      %cst_68 = arith.constant dense<0.000000e+00> : vector<8x8xf32>
      %167 = tpu.matmul %166, %151, %cst_68 {dimension_numbers = #tpu.dot_dimension_numbers<[1], [0], [0], [1], [0, 0, 1, 1], [], []>} : vector<8x8xbf16>, vector<8x8xbf16>, vector<8x8xf32> -> vector<8x8xf32>
      %168 = vector.extract_strided_slice %92 {offsets = [0, 24], sizes = [8, 8], strides = [1, 1]} : vector<8x32xf32> to vector<8x8xf32>
      %169 = arith.truncf %168 : vector<8x8xf32> to vector<8x8xbf16>
      %170 = vector.extract_strided_slice %98 {offsets = [0, 24], sizes = [8, 8], strides = [1, 1]} : vector<8x32xf32> to vector<8x8xf32>
      %171 = arith.truncf %170 : vector<8x8xf32> to vector<8x8xbf16>
      %172 = vector.extract_strided_slice %65 {offsets = [0, 24], sizes = [8, 8], strides = [1, 1]} : vector<8x32xf32> to vector<8x8xf32>
      %173 = arith.truncf %172 : vector<8x8xf32> to vector<8x8xbf16>
      %cst_69 = arith.constant dense<0.000000e+00> : vector<8x8xf32>
      %174 = tpu.matmul %169, %171, %cst_69 {dimension_numbers = #tpu.dot_dimension_numbers<[1], [1], [0], [0], [0, 0, 1, 0], [], []>} : vector<8x8xbf16>, vector<8x8xbf16>, vector<8x8xf32> -> vector<8x8xf32>
      %cst_70 = arith.constant 0.353553385 : f32
      %175 = vector.broadcast %cst_70 : f32 to vector<8x8xf32>
      %176 = arith.mulf %174, %175 : vector<8x8xf32>
      %cst_71 = arith.constant -1.000000e+30 : f32
      %177 = vector.broadcast %cst_71 : f32 to vector<8x8xf32>
      %178 = arith.select %101, %176, %177 : vector<8x8xi1>, vector<8x8xf32>
      %cst_72 = arith.constant dense<0xFF800000> : vector<8xf32>
      %179 = vector.multi_reduction <maximumf>, %178, %cst_72 [1] : vector<8x8xf32> to vector<8xf32>
      %180 = vector.shape_cast %179 : vector<8xf32> to vector<8x1xf32>
      %181 = vector.broadcast %180 : vector<8x1xf32> to vector<8x8xf32>
      %182 = arith.subf %178, %181 : vector<8x8xf32>
      %183 = math.exp %182 : vector<8x8xf32>
      %cst_73 = arith.constant dense<0.000000e+00> : vector<8xf32>
      %184 = vector.multi_reduction <add>, %183, %cst_73 [1] : vector<8x8xf32> to vector<8xf32>
      %185 = vector.shape_cast %184 : vector<8xf32> to vector<8x1xf32>
      %186 = vector.broadcast %185 : vector<8x1xf32> to vector<8x8xf32>
      %187 = arith.divf %183, %186 : vector<8x8xf32>
      %188 = arith.truncf %187 : vector<8x8xf32> to vector<8x8xbf16>
      %cst_74 = arith.constant dense<0.000000e+00> : vector<8x8xf32>
      %189 = tpu.matmul %188, %173, %cst_74 {dimension_numbers = #tpu.dot_dimension_numbers<[1], [0], [0], [1], [0, 0, 1, 1], [], []>} : vector<8x8xbf16>, vector<8x8xbf16>, vector<8x8xf32> -> vector<8x8xf32>
      %190 = tpu.concatenate %123, %145, %167, %189 in 1 : vector<8x8xf32>, vector<8x8xf32>, vector<8x8xf32>, vector<8x8xf32> -> vector<8x32xf32>
      %191 = arith.truncf %190 : vector<8x32xf32> to vector<8x32xbf16>
      %c0_75 = arith.constant 0 : index
      %c0_76 = arith.constant 0 : index
      %192 = vector.load %arg9[%c0_75, %c0_76] : memref<32x32xbf16, #tpu.memory_space<vmem>>, vector<32x32xbf16>
      %cst_77 = arith.constant dense<0.000000e+00> : vector<8x32xf32>
      %193 = tpu.matmul %191, %192, %cst_77 {dimension_numbers = #tpu.dot_dimension_numbers<[1], [0], [0], [1], [0, 0, 1, 1], [], []>} : vector<8x32xbf16>, vector<32x32xbf16>, vector<8x32xf32> -> vector<8x32xf32>
      %194 = arith.addf %32, %193 : vector<8x32xf32>
      %c0_78 = arith.constant 0 : index
      %c0_79 = arith.constant 0 : index
      %195 = vector.load %arg10[%c0_78, %c0_79] : memref<1x32xf32, #tpu.memory_space<vmem>>, vector<1x32xf32>
      %196 = vector.broadcast %195 : vector<1x32xf32> to vector<8x32xf32>
      %197 = arith.addf %194, %196 : vector<8x32xf32>
      %c0_80 = arith.constant 0 : index
      %c0_81 = arith.constant 0 : index
      %198 = vector.load %arg11[%c0_80, %c0_81] : memref<1x32xf32, #tpu.memory_space<vmem>>, vector<1x32xf32>
      %c0_82 = arith.constant 0 : index
      %c0_83 = arith.constant 0 : index
      %199 = vector.load %arg12[%c0_82, %c0_83] : memref<1x32xf32, #tpu.memory_space<vmem>>, vector<1x32xf32>
      %cst_84 = arith.constant dense<0.000000e+00> : vector<8xf32>
      %200 = vector.multi_reduction <add>, %197, %cst_84 [1] : vector<8x32xf32> to vector<8xf32>
      %201 = vector.shape_cast %200 : vector<8xf32> to vector<8x1xf32>
      %cst_85 = arith.constant 3.200000e+01 : f32
      %202 = vector.broadcast %cst_85 : f32 to vector<8x1xf32>
      %203 = arith.divf %201, %202 : vector<8x1xf32>
      %204 = vector.broadcast %203 : vector<8x1xf32> to vector<8x32xf32>
      %205 = arith.subf %197, %204 : vector<8x32xf32>
      %206 = arith.mulf %205, %205 : vector<8x32xf32>
      %cst_86 = arith.constant dense<0.000000e+00> : vector<8xf32>
      %207 = vector.multi_reduction <add>, %206, %cst_86 [1] : vector<8x32xf32> to vector<8xf32>
      %208 = vector.shape_cast %207 : vector<8xf32> to vector<8x1xf32>
      %cst_87 = arith.constant 3.200000e+01 : f32
      %209 = vector.broadcast %cst_87 : f32 to vector<8x1xf32>
      %210 = arith.divf %208, %209 : vector<8x1xf32>
      %211 = vector.broadcast %203 : vector<8x1xf32> to vector<8x32xf32>
      %212 = arith.subf %197, %211 : vector<8x32xf32>
      %cst_88 = arith.constant 9.99999974E-6 : f32
      %213 = vector.broadcast %cst_88 : f32 to vector<8x1xf32>
      %214 = arith.addf %210, %213 : vector<8x1xf32>
      %215 = math.rsqrt %214 : vector<8x1xf32>
      %216 = vector.broadcast %215 : vector<8x1xf32> to vector<8x32xf32>
      %217 = arith.mulf %212, %216 : vector<8x32xf32>
      %218 = vector.broadcast %198 : vector<1x32xf32> to vector<8x32xf32>
      %219 = arith.mulf %217, %218 : vector<8x32xf32>
      %220 = vector.broadcast %199 : vector<1x32xf32> to vector<8x32xf32>
      %221 = arith.addf %219, %220 : vector<8x32xf32>
      %222 = arith.truncf %221 : vector<8x32xf32> to vector<8x32xbf16>
      %c0_89 = arith.constant 0 : index
      %c0_90 = arith.constant 0 : index
      %223 = vector.load %arg19[%c0_89, %c0_90] : memref<8x32xbf16, #tpu.memory_space<vmem>>, vector<8x32xbf16>
      tpu.vector_store %arg19[%c0_89, %c0_90], %222 {strides = array<i32>} : memref<8x32xbf16, #tpu.memory_space<vmem>>, vector<8x32xbf16>,
      %c0_91 = arith.constant 0 : index
      %c0_92 = arith.constant 0 : index
      %224 = vector.load %arg13[%c0_91, %c0_92] : memref<32x4xf32, #tpu.memory_space<vmem>>, vector<32x4xf32>
      %cst_93 = arith.constant dense<0.000000e+00> : vector<8x4xf32>
      %225 = tpu.matmul %221, %224, %cst_93 {dimension_numbers = #tpu.dot_dimension_numbers<[1], [0], [0], [1], [0, 0, 1, 1], [], []>} : vector<8x32xf32>, vector<32x4xf32>, vector<8x4xf32> -> vector<8x4xf32>
      %cst_94 = arith.constant dense<0xFF800000> : vector<8xf32>
      %226 = vector.multi_reduction <maximumf>, %225, %cst_94 [1] : vector<8x4xf32> to vector<8xf32>
      %227 = vector.shape_cast %226 : vector<8xf32> to vector<8x1xf32>
      %228 = vector.broadcast %227 : vector<8x1xf32> to vector<8x4xf32>
      %229 = arith.subf %225, %228 : vector<8x4xf32>
      %230 = math.exp %229 : vector<8x4xf32>
      %cst_95 = arith.constant dense<0.000000e+00> : vector<8xf32>
      %231 = vector.multi_reduction <add>, %230, %cst_95 [1] : vector<8x4xf32> to vector<8xf32>
      %232 = vector.shape_cast %231 : vector<8xf32> to vector<8x1xf32>
      %233 = vector.broadcast %232 : vector<8x1xf32> to vector<8x4xf32>
      %234 = arith.divf %230, %233 : vector<8x4xf32>
      %c0_96 = arith.constant 0 : index
      %c0_97 = arith.constant 0 : index
      %235 = vector.load %arg18[%c0_96, %c0_97] : memref<8x4xf32, #tpu.memory_space<vmem>>, vector<8x4xf32>
      tpu.vector_store %arg18[%c0_96, %c0_97], %234 {strides = array<i32>} : memref<8x4xf32, #tpu.memory_space<vmem>>, vector<8x4xf32>,
      %cst_98 = arith.constant dense<0xFF800000> : vector<8xf32>
      %236 = vector.multi_reduction <maximumf>, %234, %cst_98 [1] : vector<8x4xf32> to vector<8xf32>
      %237 = vector.shape_cast %236 : vector<8xf32> to vector<8x1xf32>
      %238 = tpu.iota {dimensions = array<i32: 1>} : vector<8x4xi32>
      %239 = vector.broadcast %237 : vector<8x1xf32> to vector<8x4xf32>
      %240 = arith.cmpf oge, %234, %239 : vector<8x4xf32>
      %c4_i32 = arith.constant 4 : i32
      %241 = vector.broadcast %c4_i32 : i32 to vector<8x4xi32>
      %242 = arith.select %240, %238, %241 : vector<8x4xi1>, vector<8x4xi32>
      %cst_99 = arith.constant dense<2147483647> : vector<8xi32>
      %243 = vector.multi_reduction <minsi>, %242, %cst_99 [1] : vector<8x4xi32> to vector<8xi32>
      %244 = vector.shape_cast %243 : vector<8xi32> to vector<8x1xi32>
      %c0_100 = arith.constant 0 : index
      %c0_101 = arith.constant 0 : index
      %245 = vector.load %arg20[%c0_100, %c0_101] : memref<8x1xf32, #tpu.memory_space<vmem>>, vector<8x1xf32>
      tpu.vector_store %arg20[%c0_100, %c0_101], %237 {strides = array<i32>} : memref<8x1xf32, #tpu.memory_space<vmem>>, vector<8x1xf32>,
      %c0_102 = arith.constant 0 : index
      %c0_103 = arith.constant 0 : index
      %246 = vector.load %arg21[%c0_102, %c0_103] : memref<8x1xi32, #tpu.memory_space<vmem>>, vector<8x1xi32>
      tpu.vector_store %arg21[%c0_102, %c0_103], %244 {strides = array<i32>} : memref<8x1xi32, #tpu.memory_space<vmem>>, vector<8x1xi32>,
      %c0_104 = arith.constant 0 : index
      %c0_105 = arith.constant 0 : index
      %247 = vector.load %arg17[%c0_104, %c0_105] : memref<8x32xf32, #tpu.memory_space<vmem>>, vector<8x32xf32>
      tpu.vector_store %arg17[%c0_104, %c0_105], %197 {strides = array<i32>} : memref<8x32xf32, #tpu.memory_space<vmem>>, vector<8x32xf32>,
    } else {
    }
    %c0 = arith.constant 0 : index
    %c0_1 = arith.constant 0 : index
    %3 = vector.load %arg19[%c0, %c0_1] : memref<8x32xbf16, #tpu.memory_space<vmem>>, vector<8x32xbf16>
    %c0_2 = arith.constant 0 : index
    %c0_3 = arith.constant 0 : index
    %c0_4 = arith.constant 0 : index
    %4 = vector.load %arg14[%c0_2, %c0_3, %c0_4] : memref<1x32x128xbf16, #tpu.memory_space<vmem>>, vector<1x32x128xbf16>
    %5 = vector.shape_cast %4 : vector<1x32x128xbf16> to vector<32x128xbf16>
    %cst = arith.constant dense<0.000000e+00> : vector<8x128xf32>
    %6 = tpu.matmul %3, %5, %cst {dimension_numbers = #tpu.dot_dimension_numbers<[1], [0], [0], [1], [0, 0, 1, 1], [], []>} : vector<8x32xbf16>, vector<32x128xbf16>, vector<8x128xf32> -> vector<8x128xf32>
    %c0_5 = arith.constant 0 : index
    %c0_6 = arith.constant 0 : index
    %c0_7 = arith.constant 0 : index
    %7 = vector.load %arg15[%c0_5, %c0_6, %c0_7] : memref<1x32x128xbf16, #tpu.memory_space<vmem>>, vector<1x32x128xbf16>
    %8 = vector.shape_cast %7 : vector<1x32x128xbf16> to vector<32x128xbf16>
    %cst_8 = arith.constant dense<0.000000e+00> : vector<8x128xf32>
    %9 = tpu.matmul %3, %8, %cst_8 {dimension_numbers = #tpu.dot_dimension_numbers<[1], [0], [0], [1], [0, 0, 1, 1], [], []>} : vector<8x32xbf16>, vector<32x128xbf16>, vector<8x128xf32> -> vector<8x128xf32>
    %10 = arith.negf %9 : vector<8x128xf32>
    %11 = math.exp %10 : vector<8x128xf32>
    %cst_9 = arith.constant 1.000000e+00 : f32
    %12 = vector.broadcast %cst_9 : f32 to vector<8x128xf32>
    %13 = arith.addf %12, %11 : vector<8x128xf32>
    %14 = arith.divf %12, %13 : vector<8x128xf32>
    %15 = arith.mulf %9, %14 : vector<8x128xf32>
    %16 = arith.mulf %6, %15 : vector<8x128xf32>
    %17 = arith.truncf %16 : vector<8x128xf32> to vector<8x128xbf16>
    %c0_10 = arith.constant 0 : index
    %c0_11 = arith.constant 0 : index
    %c0_12 = arith.constant 0 : index
    %18 = vector.load %arg16[%c0_10, %c0_11, %c0_12] : memref<1x128x32xbf16, #tpu.memory_space<vmem>>, vector<1x128x32xbf16>
    %19 = vector.shape_cast %18 : vector<1x128x32xbf16> to vector<128x32xbf16>
    %cst_13 = arith.constant dense<0.000000e+00> : vector<8x32xf32>
    %20 = tpu.matmul %17, %19, %cst_13 {dimension_numbers = #tpu.dot_dimension_numbers<[1], [0], [0], [1], [0, 0, 1, 1], [], []>} : vector<8x128xbf16>, vector<128x32xbf16>, vector<8x32xf32> -> vector<8x32xf32>
    %c0_14 = arith.constant 0 : index
    %c0_15 = arith.constant 0 : index
    %21 = vector.load %arg21[%c0_14, %c0_15] : memref<8x1xi32, #tpu.memory_space<vmem>>, vector<8x1xi32>
    %22 = vector.broadcast %arg1 : i32 to vector<8x1xi32>
    %23 = arith.cmpi eq, %21, %22 : vector<8x1xi32>
    %c0_16 = arith.constant 0 : index
    %c0_17 = arith.constant 0 : index
    %24 = vector.load %arg20[%c0_16, %c0_17] : memref<8x1xf32, #tpu.memory_space<vmem>>, vector<8x1xf32>
    %cst_18 = arith.constant 0.000000e+00 : f32
    %25 = vector.broadcast %cst_18 : f32 to vector<8x1xf32>
    %26 = arith.select %23, %24, %25 : vector<8x1xi1>, vector<8x1xf32>
    %c0_19 = arith.constant 0 : index
    %c0_20 = arith.constant 0 : index
    %27 = vector.load %arg17[%c0_19, %c0_20] : memref<8x32xf32, #tpu.memory_space<vmem>>, vector<8x32xf32>
    %28 = vector.broadcast %26 : vector<8x1xf32> to vector<8x32xf32>
    %29 = arith.mulf %28, %20 : vector<8x32xf32>
    %30 = arith.addf %27, %29 : vector<8x32xf32>
    %c0_21 = arith.constant 0 : index
    %c0_22 = arith.constant 0 : index
    %31 = vector.load %arg17[%c0_21, %c0_22] : memref<8x32xf32, #tpu.memory_space<vmem>>, vector<8x32xf32>
    tpu.vector_store %arg17[%c0_21, %c0_22], %30 {strides = array<i32>} : memref<8x32xf32, #tpu.memory_space<vmem>>, vector<8x32xf32>,
    return
  }
  func.func @transform_0(%arg0: i32, %arg1: i32) -> (i32, i32) {
    %c0_i32 = arith.constant 0 : i32
    %c0_i32_0 = arith.constant 0 : i32
    return %arg0, %c0_i32 : i32, i32
  }
  func.func @transform_1(%arg0: i32, %arg1: i32) -> (i32, i32) {
    %c0_i32 = arith.constant 0 : i32
    %c0_i32_0 = arith.constant 0 : i32
    %c0_i32_1 = arith.constant 0 : i32
    return %c0_i32, %c0_i32_0 : i32, i32
  }
  func.func @transform_2(%arg0: i32, %arg1: i32) -> (i32, i32) {
    %c0_i32 = arith.constant 0 : i32
    %c0_i32_0 = arith.constant 0 : i32
    %c0_i32_1 = arith.constant 0 : i32
    return %c0_i32, %c0_i32_0 : i32, i32
  }
  func.func @transform_3(%arg0: i32, %arg1: i32) -> (i32, i32) {
    %c0_i32 = arith.constant 0 : i32
    %c0_i32_0 = arith.constant 0 : i32
    %c0_i32_1 = arith.constant 0 : i32
    return %c0_i32, %c0_i32_0 : i32, i32
  }
  func.func @transform_4(%arg0: i32, %arg1: i32) -> (i32, i32) {
    %c0_i32 = arith.constant 0 : i32
    %c0_i32_0 = arith.constant 0 : i32
    %c0_i32_1 = arith.constant 0 : i32
    return %c0_i32, %c0_i32_0 : i32, i32
  }
  func.func @transform_5(%arg0: i32, %arg1: i32) -> (i32, i32) {
    %c0_i32 = arith.constant 0 : i32
    %c0_i32_0 = arith.constant 0 : i32
    %c0_i32_1 = arith.constant 0 : i32
    return %c0_i32, %c0_i32_0 : i32, i32
  }
  func.func @transform_6(%arg0: i32, %arg1: i32) -> (i32, i32) {
    %c0_i32 = arith.constant 0 : i32
    %c0_i32_0 = arith.constant 0 : i32
    %c0_i32_1 = arith.constant 0 : i32
    return %c0_i32, %c0_i32_0 : i32, i32
  }
  func.func @transform_7(%arg0: i32, %arg1: i32) -> (i32, i32) {
    %c0_i32 = arith.constant 0 : i32
    %c0_i32_0 = arith.constant 0 : i32
    %c0_i32_1 = arith.constant 0 : i32
    return %c0_i32, %c0_i32_0 : i32, i32
  }
  func.func @transform_8(%arg0: i32, %arg1: i32) -> (i32, i32) {
    %c0_i32 = arith.constant 0 : i32
    %c0_i32_0 = arith.constant 0 : i32
    %c0_i32_1 = arith.constant 0 : i32
    return %c0_i32, %c0_i32_0 : i32, i32
  }
  func.func @transform_9(%arg0: i32, %arg1: i32) -> (i32, i32) {
    %c0_i32 = arith.constant 0 : i32
    %c0_i32_0 = arith.constant 0 : i32
    %c0_i32_1 = arith.constant 0 : i32
    return %c0_i32, %c0_i32_0 : i32, i32
  }
  func.func @transform_10(%arg0: i32, %arg1: i32) -> (i32, i32) {
    %c0_i32 = arith.constant 0 : i32
    %c0_i32_0 = arith.constant 0 : i32
    %c0_i32_1 = arith.constant 0 : i32
    return %c0_i32, %c0_i32_0 : i32, i32
  }
  func.func @transform_11(%arg0: i32, %arg1: i32) -> (i32, i32) {
    %c0_i32 = arith.constant 0 : i32
    %c0_i32_0 = arith.constant 0 : i32
    %c0_i32_1 = arith.constant 0 : i32
    return %c0_i32, %c0_i32_0 : i32, i32
  }
  func.func @transform_12(%arg0: i32, %arg1: i32) -> (i32, i32, i32) {
    %c0_i32 = arith.constant 0 : i32
    %c0_i32_0 = arith.constant 0 : i32
    %c0_i32_1 = arith.constant 0 : i32
    return %arg1, %c0_i32, %c0_i32_0 : i32, i32, i32
  }
  func.func @transform_13(%arg0: i32, %arg1: i32) -> (i32, i32, i32) {
    %c0_i32 = arith.constant 0 : i32
    %c0_i32_0 = arith.constant 0 : i32
    %c0_i32_1 = arith.constant 0 : i32
    return %arg1, %c0_i32, %c0_i32_0 : i32, i32, i32
  }
  func.func @transform_14(%arg0: i32, %arg1: i32) -> (i32, i32, i32) {
    %c0_i32 = arith.constant 0 : i32
    %c0_i32_0 = arith.constant 0 : i32
    %c0_i32_1 = arith.constant 0 : i32
    return %arg1, %c0_i32, %c0_i32_0 : i32, i32, i32
  }
  func.func @transform_15(%arg0: i32, %arg1: i32) -> (i32, i32) {
    %c0_i32 = arith.constant 0 : i32
    %c0_i32_0 = arith.constant 0 : i32
    return %arg0, %c0_i32 : i32, i32
  }
  func.func @transform_16(%arg0: i32, %arg1: i32) -> (i32, i32) {
    %c0_i32 = arith.constant 0 : i32
    %c0_i32_0 = arith.constant 0 : i32
    return %arg0, %c0_i32 : i32, i32
  }
}

</mosaic_0001>

<llo_original>
// kernel: tile.15
$region0: #{tile.15}
  #allocation0 [shape = 's32[1]{0}', space=sflag, size = 0x4, scoped, tag = 'scoped memory for tile.15']
  %s0 = inlined_call_operand.vmem [shape: f32[2], index: 0, kind: input, shape index: {}]
  %s1 = inlined_call_operand.vmem [shape: f32[4,2], index: 1, kind: output, shape index: {}]
  // Predicated region
  $region2: #{tile.15} parent=0 // pred_check
    _
  $region3: #{tile.15} parent=0 // pred_check_branch
    %3 = sbr.rel (0) target = $region5
  $region4: #{tile.15} parent=0 // pred_region
    _
  $region5: #{tile.15} parent=0 // pred_fallthru
    _
  %v4 = vld [vmem:[%s0] ss:$0 sm:$0xff]
  %5 = vst [vmem:[%s1] sm:$0xf] %v4

// kernel: tile.25
$region0: #{tile.25}
  %s0 = inlined_call_operand.vmem [shape: f32[8,4,8], index: 0, kind: input, shape index: {}]
  %s1 = inlined_call_operand.vmem [shape: f32[8,32], index: 1, kind: output, shape index: {}]
  $region1: #{tile.25} parent=0
    #allocation0 [shape = 'u8[32768]{0}', space=vmem, size = 0x8000, scoped, tag = 'scoped mem for input reshape']
    %s3 = sshllo.u32 0, 4
    %s4 = smul.addr 4, 7
    %s5 = scalar_lea.vmem %s0, %s4
    %v6 = vld [vmem:[%s5] sm:%s3]
    %s7 = scalar_lea.vmem [#allocation0], 56
    %8 = vst [vmem:[%s7] sm:%s3] %v6
    %s9 = smul.addr 4, 6
    %s10 = scalar_lea.vmem %s0, %s9
    %v11 = vld [vmem:[%s10] sm:%s3]
    %s12 = scalar_lea.vmem [#allocation0], 48
    %13 = vst [vmem:[%s12] sm:%s3] %v11
    %s14 = smul.addr 4, 5
    %s15 = scalar_lea.vmem %s0, %s14
    %v16 = vld [vmem:[%s15] sm:%s3]
    %s17 = scalar_lea.vmem [#allocation0], 40
    %18 = vst [vmem:[%s17] sm:%s3] %v16
    %s19 = smul.addr 4, 4
    %s20 = scalar_lea.vmem %s0, %s19
    %v21 = vld [vmem:[%s20] sm:%s3]
    %s22 = scalar_lea.vmem [#allocation0], 32
    %23 = vst [vmem:[%s22] sm:%s3] %v21
    %s24 = smul.addr 4, 3
    %s25 = scalar_lea.vmem %s0, %s24
    %v26 = vld [vmem:[%s25] sm:%s3]
    %s27 = scalar_lea.vmem [#allocation0], 24
    %28 = vst [vmem:[%s27] sm:%s3] %v26
    %s29 = smul.addr 4, 2
    %s30 = scalar_lea.vmem %s0, %s29
    %v31 = vld [vmem:[%s30] sm:%s3]
    %s32 = scalar_lea.vmem [#allocation0], 16
    %33 = vst [vmem:[%s32] sm:%s3] %v31
    %s34 = scalar_lea.vmem %s0, 4
    %v35 = vld [vmem:[%s34] sm:%s3]
    %s36 = scalar_lea.vmem [#allocation0], 8
    %37 = vst [vmem:[%s36] sm:%s3] %v35
    %v38 = vld [vmem:[%s0] sm:%s3]
    %39 = vst [vmem:[#allocation0] sm:%s3] %v38
    %v40 = vld [vmem:[#allocation0] ss:$8 sm:$0xf]
    %v41 = vld [vmem:[#allocation0] ss:$8 sm:$0xf0]
    %vm42 = vcmask 1047556
    %v43 = vsel %vm42, %v41, %v40
    %vm44 = vcmask 64512
    %45 = vst.msk [vmem:[%s1] sm:$0xff] %vm44, %v43
    %s46 = scalar_lea.vmem [#allocation0], 3
    %v47 = vld [vmem:[%s46] ss:$8 sm:$0xf]
    %s48 = scalar_lea.vmem [#allocation0], 3
    %v49 = vld [vmem:[%s48] ss:$8 sm:$0xf0]
    %vm50 = vcmask 1047556
    %v51 = vsel %vm50, %v49, %v47
    %52 = vrot.lane.b32.xlu0 %v51, 24
    %v53 = vpop.permute.xlu0 %52
    %vm54 = vcmask 261312
    %55 = vst.msk [vmem:[%s1] sm:$0xff] %vm54, %v53
    %s56 = scalar_lea.vmem [#allocation0], 2
    %v57 = vld [vmem:[%s56] ss:$8 sm:$0xf]
    %s58 = scalar_lea.vmem [#allocation0], 2
    %v59 = vld [vmem:[%s58] ss:$8 sm:$0xf0]
    %vm60 = vcmask 1047556
    %v61 = vsel %vm60, %v59, %v57
    %62 = vrot.lane.b32.xlu0 %v61, 16
    %v63 = vpop.permute.xlu0 %62
    %vm64 = vcmask 195712
    %65 = vst.msk [vmem:[%s1] sm:$0xff] %vm64, %v63
    %s66 = scalar_lea.vmem [#allocation0], 1
    %v67 = vld [vmem:[%s66] ss:$8 sm:$0xf]
    %s68 = scalar_lea.vmem [#allocation0], 1
    %v69 = vld [vmem:[%s68] ss:$8 sm:$0xf0]
    %vm70 = vcmask 1047556
    %v71 = vsel %vm70, %v69, %v67
    %72 = vrot.lane.b32.xlu0 %v71, 8
    %v73 = vpop.permute.xlu0 %72
    %vm74 = vcmask 130112
    %75 = vst.msk [vmem:[%s1] sm:$0xff] %vm74, %v73

// kernel: model_forward.5
$region0: #{model_forward.5}
  #allocation0 [shape = 'u32[]', space=smem, size = 0x4, offset = 0x4, fixed_abs, tag = 'smem constant byte address 0x4 - core index']
  #allocation1 [shape = 'u32[144,128]{1,0:T(1,128)}', space=vmem, size = 0x12000, scoped, tag = 'internal scratch']
  %s0 = inlined_call_operand.vmem [shape: f32[16,32], index: 0, kind: input, shape index: {}]
  %s1 = inlined_call_operand.vmem [shape: f32[1,32], index: 1, kind: input, shape index: {}]
  %s2 = inlined_call_operand.vmem [shape: f32[1,32], index: 2, kind: input, shape index: {}]
  %s3 = inlined_call_operand.vmem [shape: bf16[32,64], index: 3, kind: input, shape index: {}]
  %s4 = inlined_call_operand.vmem [shape: f32[16,64], index: 4, kind: output, shape index: {}]
  %s5 = sld [smem:[#allocation0]]
  $region49: #{model_forward.5} parent=0
    _
  %s7 = ssub.s32 1, %s5
  %s8 = scalar_select 0, %s7, %s5
  loop: start=0, step=1, limit=4
  $region2: #{model_forward.5} parent=0 // loop_pre_header
    _
  $region3: #{model_forward.5} parent=0 // loop_header
    %s10 = sphi 0, %s14
    %p11 = scmp.ge.s32.totalorder %s10, 4
    %s20 = sphi 0, %s22
    %s23 = sphi 0, %s20
    %s24 = sphi 0, %s23
    %s40 = sphi 0, %s24
    %s44 = sphi 0, %s44
    %s46 = sphi 0, %s44
    %s47 = sphi 0, %s46
    %s61 = sphi 0, %s47
    %s65 = sphi 0, %s65
    %s67 = sphi 0, %s65
    %s68 = sphi 0, %s67
    %s82 = sphi 0, %s68
    %s86 = sphi 0, %s86
    %s88 = sphi 0, %s86
    %s89 = sphi 0, %s88
    %s103 = sphi 0, %s89
    %s109 = sphi 0, %s111
    %s112 = sphi 0, %s109
    %s113 = sphi 0, %s112
    %s129 = sphi 0, %s113
  $region4: #{model_forward.5} parent=0 // loop_header_branch
    %13 = sbr.rel (%p11) target = $region8
  $region5: #{model_forward.5} parent=0 // loop_body
    %s15 = ssub.s32 %s10, 1
    %s16 = ssub.s32 %s10, 2
    %s17 = sadd.s32 %s10, 1
    %s18 = ssub.s32 %s10, %s17
    %p19 = scmp.eq.s32.totalorder %s18, 0
    %s21 = sadd.s32 %s20, 1
    %s22 = scalar_select %p19, %s20, %s21
    %p25 = pneg %p19
    %p26 = scmp.eq.s32.totalorder %s10, 1
    %p27 = por %p25, %p26
    %p28 = scmp.ne.s32.totalorder %s20, %s23
    %p29 = scmp.eq.s32.totalorder %s10, 0
    %p30 = por %p28, %p29
    %p31 = scmp.ne.s32.totalorder %s20, %s23
    %p32 = scmp.eq.s32.totalorder %s15, 1
    %p33 = por %p31, %p32
    %p34 = scmp.ne.s32.totalorder %s23, %s24
    %p35 = scmp.eq.s32.totalorder %s15, 0
    %p36 = por %p34, %p35
    %p37 = scmp.ne.s32.totalorder %s23, %s24
    %p38 = scmp.eq.s32.totalorder %s16, 1
    %p39 = por %p37, %p38
    %p41 = scmp.ne.s32.totalorder %s24, %s40
    %p42 = scmp.eq.s32.totalorder %s16, 0
    %p43 = por %p41, %p42
    %s45 = sadd.s32 %s44, 1
    %p48 = scmp.eq.s32.totalorder %s10, 1
    %p49 = scmp.ne.s32.totalorder %s44, %s46
    %p50 = scmp.eq.s32.totalorder %s10, 0
    %p51 = por %p49, %p50
    %p52 = scmp.ne.s32.totalorder %s44, %s46
    %p53 = scmp.eq.s32.totalorder %s15, 1
    %p54 = por %p52, %p53
    %p55 = scmp.ne.s32.totalorder %s46, %s47
    %p56 = scmp.eq.s32.totalorder %s15, 0
    %p57 = por %p55, %p56
    %p58 = scmp.ne.s32.totalorder %s46, %s47
    %p59 = scmp.eq.s32.totalorder %s16, 1
    %p60 = por %p58, %p59
    %p62 = scmp.ne.s32.totalorder %s47, %s61
    %p63 = scmp.eq.s32.totalorder %s16, 0
    %p64 = por %p62, %p63
    %s66 = sadd.s32 %s65, 1
    %p69 = scmp.eq.s32.totalorder %s10, 1
    %p70 = scmp.ne.s32.totalorder %s65, %s67
    %p71 = scmp.eq.s32.totalorder %s10, 0
    %p72 = por %p70, %p71
    %p73 = scmp.ne.s32.totalorder %s65, %s67
    %p74 = scmp.eq.s32.totalorder %s15, 1
    %p75 = por %p73, %p74
    %p76 = scmp.ne.s32.totalorder %s67, %s68
    %p77 = scmp.eq.s32.totalorder %s15, 0
    %p78 = por %p76, %p77
    %p79 = scmp.ne.s32.totalorder %s67, %s68
    %p80 = scmp.eq.s32.totalorder %s16, 1
    %p81 = por %p79, %p80
    %p83 = scmp.ne.s32.totalorder %s68, %s82
    %p84 = scmp.eq.s32.totalorder %s16, 0
    %p85 = por %p83, %p84
    %s87 = sadd.s32 %s86, 1
    %p90 = scmp.eq.s32.totalorder %s10, 1
    %p91 = scmp.ne.s32.totalorder %s86, %s88
    %p92 = scmp.eq.s32.totalorder %s10, 0
    %p93 = por %p91, %p92
    %p94 = scmp.ne.s32.totalorder %s86, %s88
    %p95 = scmp.eq.s32.totalorder %s15, 1
    %p96 = por %p94, %p95
    %p97 = scmp.ne.s32.totalorder %s88, %s89
    %p98 = scmp.eq.s32.totalorder %s15, 0
    %p99 = por %p97, %p98
    %p100 = scmp.ne.s32.totalorder %s88, %s89
    %p101 = scmp.eq.s32.totalorder %s16, 1
    %p102 = por %p100, %p101
    %p104 = scmp.ne.s32.totalorder %s89, %s103
    %p105 = scmp.eq.s32.totalorder %s16, 0
    %p106 = por %p104, %p105
    %s107 = ssub.s32 %s10, %s17
    %p108 = scmp.eq.s32.totalorder %s107, 0
    %s110 = sadd.s32 %s109, 1
    %s111 = scalar_select %p108, %s109, %s110
    %p114 = pneg %p108
    %p115 = scmp.eq.s32.totalorder %s10, 1
    %p116 = por %p114, %p115
    %p117 = scmp.ne.s32.totalorder %s109, %s112
    %p118 = scmp.eq.s32.totalorder %s10, 0
    %p119 = por %p117, %p118
    %p120 = scmp.ne.s32.totalorder %s109, %s112
    %p121 = scmp.eq.s32.totalorder %s15, 1
    %p122 = por %p120, %p121
    %p123 = scmp.ne.s32.totalorder %s112, %s113
    %p124 = scmp.eq.s32.totalorder %s15, 0
    %p125 = por %p123, %p124
    %p126 = scmp.ne.s32.totalorder %s112, %s113
    %p127 = scmp.eq.s32.totalorder %s16, 1
    %p128 = por %p126, %p127
    %p130 = scmp.ne.s32.totalorder %s113, %s129
    %p131 = scmp.eq.s32.totalorder %s16, 0
    %p132 = por %p130, %p131
    %p133 = scmp.le.s32.totalorder 1, %s10
    %p134 = scmp.lt.s32.totalorder %s10, 3
    %p135 = pnand %p133, %p134
    %p136 = pneg %p135
    // Predicated region
    $region9: #{model_forward.5} parent=5 // pred_check
      _
    $region10: #{model_forward.5} parent=5 // pred_check_branch
      %138 = sbr.rel (%p135) target = $region12
    $region11: #{model_forward.5} parent=5 // pred_region
      %s139 = ssub.s32 %s10, 1
      // Predicated region
      $region13: #{model_forward.5} parent=11 // pred_check
        %p140 = pneg %p57
      $region14: #{model_forward.5} parent=11 // pred_check_branch
        %142 = sbr.rel (%p140) target = $region16
      $region15: #{model_forward.5} parent=11 // pred_region
        _
      $region16: #{model_forward.5} parent=11 // pred_fallthru
        _
      // Predicated region
      $region17: #{model_forward.5} parent=11 // pred_check
        %p143 = pneg %p78
      $region18: #{model_forward.5} parent=11 // pred_check_branch
        %145 = sbr.rel (%p143) target = $region20
      $region19: #{model_forward.5} parent=11 // pred_region
        _
      $region20: #{model_forward.5} parent=11 // pred_fallthru
        _
      // Predicated region
      $region21: #{model_forward.5} parent=11 // pred_check
        %p146 = pneg %p99
      $region22: #{model_forward.5} parent=11 // pred_check_branch
        %148 = sbr.rel (%p146) target = $region24
      $region23: #{model_forward.5} parent=11 // pred_region
        _
      $region24: #{model_forward.5} parent=11 // pred_fallthru
        _
    $region12: #{model_forward.5} parent=5 // pred_fallthru
      _
    %p149 = scmp.lt.s32.totalorder %s10, 2
    // Predicated region
    $region25: #{model_forward.5} parent=5 // pred_check
      %p150 = pneg %p149
    $region26: #{model_forward.5} parent=5 // pred_check_branch
      %152 = sbr.rel (%p150) target = $region28
    $region27: #{model_forward.5} parent=5 // pred_region
      // Predicated region
      $region29: #{model_forward.5} parent=27 // pred_check
        %p153 = pneg %p30
      $region30: #{model_forward.5} parent=27 // pred_check_branch
        %155 = sbr.rel (%p153) target = $region32
      $region31: #{model_forward.5} parent=27 // pred_region
        %p156 = scmp.lt.s32.totalorder %s10, 1
        %s157 = scalar_select %p156, %s10, 1
        %s158 = smul.addr %s157, 8
        %s159 = scalar_lea.vmem %s0, %s158
      $region32: #{model_forward.5} parent=27 // pred_fallthru
        _
    $region28: #{model_forward.5} parent=5 // pred_fallthru
      _
    %p160 = scmp.le.s32.totalorder 1, %s10
    %p161 = scmp.lt.s32.totalorder %s10, 3
    %p162 = pnand %p160, %p161
    %p163 = pneg %p162
    // Predicated region
    $region33: #{model_forward.5} parent=5 // pred_check
      _
    $region34: #{model_forward.5} parent=5 // pred_check_branch
      %165 = sbr.rel (%p162) target = $region36
    $region35: #{model_forward.5} parent=5 // pred_region
      %s166 = ssub.s32 %s10, 1
      %p167 = scmp.lt.s32.totalorder %s15, 1
      %s168 = scalar_select %p167, %s15, 1
      %s169 = smul.addr %s168, 8
      %s170 = scalar_lea.vmem %s0, %s169
      %p171 = pneg %p36
      %p172 = pneg %p33
      %p173 = pneg %p57
      %p174 = pneg %p54
      %p175 = pneg %p78
      %p176 = pneg %p75
      %p177 = pneg %p99
      %p178 = pneg %p96
      %p179 = pneg %p125
      %p180 = pneg %p122
      %p181 = scmp.lt.s32.totalorder %s15, 1
      %s182 = scalar_select %p181, %s15, 1
      %s183 = smul.addr %s182, 8
      %s184 = scalar_lea.vmem %s4, %s183
      %p185 = scmp.lt.s32.totalorder %s15, 1
      %s186 = scalar_select %p185, %s15, 1
      %s187 = smul.addr %s186, 8
      %s188 = scalar_lea.vmem %s0, %s187
      %p189 = scmp.lt.s32.totalorder %s15, 1
      %s190 = scalar_select %p189, %s15, 1
      %s191 = smul.addr %s190, 8
      %s192 = scalar_lea.vmem %s4, %s191
      %v194 = vld [vmem:[%s188] sm:$0xff]
      %v195 = vld [vmem:[%s1] sm:$0x1]
      %v196 = vld [vmem:[%s2] sm:$0x1]
      %vm197 = vcmask 261120
      %v198 = vsel %vm197, %v194, 0.0
      %199 = vadd.xlane.f32.xlu0 %v198
      %v200 = vpop.xlane.xlu0 %199
      %v201 = vrcp.pop 32.0
      %v202 = vmul.f32 %v200, %v201
      %v203 = vsub.f32 %v194, %v202
      %v204 = vmul.f32 %v203, %v203
      %v205 = vsel %vm197, %v204, 0.0
      %206 = vadd.xlane.f32.xlu0 %v205
      %v207 = vpop.xlane.xlu0 %206
      %v208 = vmul.f32 %v207, %v201
      %v209 = vadd.f32 %v208, 1e-05
      %v210 = vrsqrt.pop %v209
      %v211 = vmul.f32 %v203, %v210
      %v213 = vlaneseq
      %v214 = vshrl.u32 %v213, 7
      %v215 = vsub.s32 0, %v214
      %v216 = vrot.slane %v195, %v215
      %v218 = vmul.f32 %v211, %v216
      %v220 = vlaneseq
      %v221 = vshrl.u32 %v220, 7
      %v222 = vsub.s32 0, %v221
      %v223 = vrot.slane %v196, %v222
      %v225 = vadd.f32 %v218, %v223
      %v226 = vpack.c.bf16 %v225, %v225
      %v227 = vld [vmem:[%s3] sm:$0xf]
      %v228 = vld [vmem:[%s3 + $0x4] sm:$0xf]
      %v229 = vld [vmem:[%s3 + $0x8] sm:$0xf]
      %v230 = vld [vmem:[%s3 + $0xc] sm:$0xf]
      %v235 = vunpack.c.l.b16 %v227
      %v236 = vunpack.c.l.b16 %v228
      %v237 = vunpack.c.l.b16 %v229
      %v238 = vunpack.c.l.b16 %v230
      %v239 = vpack.c.b16 %v236, %v235
      %v240 = vpack.c.b16 %v238, %v237
      %v244 = vsel %vm197, %v226, 0
      %246 = vmatprep.subr.bf16.mxu0 0
      %247 = vmatpush1.bf16.msra.mxu0 %v239
      %248 = vmatprep.subr.bf16.mxu0 0
      %249 = vmatpush1.bf16.msra.mxu0 %v240
      %250 = vmatprep.subr.bf16.mxu0 0
      %251 = vmatpush1.bf16.msra.mxu0 0
      %252 = vmatprep.subr.bf16.mxu0 0
      %253 = vmatpush1.bf16.msra.mxu0 0
      %254 = vmatprep.subr.bf16.mxu0 0
      %255 = vmatpush1.bf16.msra.mxu0 0
      %256 = vmatprep.subr.bf16.mxu0 0
      %257 = vmatpush1.bf16.msra.mxu0 0
      %258 = vmatprep.subr.bf16.mxu0 0
      %259 = vmatpush1.bf16.msra.mxu0 0
      %260 = vmatprep.subr.bf16.mxu0 0
      %261 = vmatpush1.bf16.msra.mxu0 0
      %262 = vmatprep.subr.bf16.mxu0 0
      %263 = vmatpush1.bf16.msra.mxu0 0
      %264 = vmatprep.subr.bf16.mxu0 0
      %265 = vmatpush1.bf16.msra.mxu0 0
      %266 = vmatprep.subr.bf16.mxu0 0
      %267 = vmatpush1.bf16.msra.mxu0 0
      %268 = vmatprep.subr.bf16.mxu0 0
      %269 = vmatpush1.bf16.msra.mxu0 0
      %270 = vmatprep.subr.bf16.mxu0 0
      %271 = vmatpush1.bf16.msra.mxu0 0
      %272 = vmatprep.subr.bf16.mxu0 0
      %273 = vmatpush1.bf16.msra.mxu0 0
      %274 = vmatprep.subr.bf16.mxu0 0
      %275 = vmatpush1.bf16.msra.mxu0 0
      %276 = vmatprep.subr.bf16.mxu0 0
      %277 = vmatpush1.bf16.msra.mxu0 0
      %278 = vmatprep.mubr.bf16.mxu0 0
      %279 = vmatmul.mubr.bf16.gmra.mrb[0].mxu0 %v244
      %v280 = vpop.f32.mrb[0].mxu0
      %v281 = vadd.f32 0.0, %v280
      %v282 = vpop.f32.mrb[0].mxu0
      %v283 = vpop.f32.mrb[0].mxu0
      %v284 = vpop.f32.mrb[0].mxu0
      %285 = vdwg.mxu0
      %vm286 = vcmask 523264
      %287 = vst.msk [vmem:[%s192] sm:$0xff] %vm286, %v281
      %p288 = scmp.lt.s32.totalorder %s15, 1
      %s289 = scalar_select %p288, %s15, 1
      %s290 = smul.addr %s289, 8
      %s291 = scalar_lea.vmem %s4, %s290
      // Predicated region
      $region37: #{model_forward.5} parent=35 // pred_check
        %p292 = pneg %p122
      $region38: #{model_forward.5} parent=35 // pred_check_branch
        %294 = sbr.rel (%p292) target = $region40
      $region39: #{model_forward.5} parent=35 // pred_region
        _
      $region40: #{model_forward.5} parent=35 // pred_fallthru
        _
    $region36: #{model_forward.5} parent=5 // pred_fallthru
      _
    %p295 = scmp.le.s32.totalorder 2, %s10
    // Predicated region
    $region41: #{model_forward.5} parent=5 // pred_check
      %p296 = pneg %p295
    $region42: #{model_forward.5} parent=5 // pred_check_branch
      %298 = sbr.rel (%p296) target = $region44
    $region43: #{model_forward.5} parent=5 // pred_region
      %s299 = ssub.s32 %s10, 2
      // Predicated region
      $region45: #{model_forward.5} parent=43 // pred_check
        %p300 = pneg %p128
      $region46: #{model_forward.5} parent=43 // pred_check_branch
        %302 = sbr.rel (%p300) target = $region48
      $region47: #{model_forward.5} parent=43 // pred_region
        %p303 = scmp.lt.s32.totalorder %s16, 1
        %s304 = scalar_select %p303, %s16, 1
        %s305 = smul.addr %s304, 8
        %s306 = scalar_lea.vmem %s4, %s305
      $region48: #{model_forward.5} parent=43 // pred_fallthru
        _
    $region44: #{model_forward.5} parent=5 // pred_fallthru
      _
  $region6: #{model_forward.5} parent=0 // loop_footer
    %s14 = sadd.s32 1, %s10
  $region7: #{model_forward.5} parent=0 // loop_footer_branch
    %9 = sbr.rel target = $region3
  $region8: #{model_forward.5} parent=0 // loop_exit
    _

// kernel: model_forward.3
$region0: #{model_forward.3}
  #allocation0 [shape = 'u32[]', space=smem, size = 0x4, offset = 0x4, fixed_abs, tag = 'smem constant byte address 0x4 - core index']
  #allocation1 [shape = 'u32[144,128]{1,0:T(1,128)}', space=vmem, size = 0x12000, scoped, tag = 'internal scratch']
  #allocation2 [shape = 'bf16[8,32]{1,0:T(8,128)(2,1)}', space=vmem, size = 0x800, scoped, tag = 'scratch operand']
  #allocation3 [shape = 'f32[8,1]{1,0:T(8,128)}', space=vmem, size = 0x1000, scoped, tag = 'scratch operand']
  #allocation4 [shape = 's32[8,1]{1,0:T(8,128)}', space=vmem, size = 0x1000, scoped, tag = 'scratch operand']
  %s0 = inlined_call_operand.vmem [shape: f32[16,32], index: 0, kind: input, shape index: {}]
  %s1 = inlined_call_operand.vmem [shape: f32[1,32], index: 1, kind: input, shape index: {}]
  %s2 = inlined_call_operand.vmem [shape: f32[1,32], index: 2, kind: input, shape index: {}]
  %s3 = inlined_call_operand.vmem [shape: bf16[32,96], index: 3, kind: input, shape index: {}]
  %s4 = inlined_call_operand.vmem [shape: f32[1,96], index: 4, kind: input, shape index: {}]
  %s5 = inlined_call_operand.vmem [shape: f32[8,32], index: 5, kind: input, shape index: {}]
  %s6 = inlined_call_operand.vmem [shape: f32[8,32], index: 6, kind: input, shape index: {}]
  %s7 = inlined_call_operand.vmem [shape: bf16[32,32], index: 7, kind: input, shape index: {}]
  %s8 = inlined_call_operand.vmem [shape: f32[1,32], index: 8, kind: input, shape index: {}]
  %s9 = inlined_call_operand.vmem [shape: f32[1,32], index: 9, kind: input, shape index: {}]
  %s10 = inlined_call_operand.vmem [shape: f32[1,32], index: 10, kind: input, shape index: {}]
  %s11 = inlined_call_operand.vmem [shape: f32[32,4], index: 11, kind: input, shape index: {}]
  %s12 = inlined_call_operand.vmem [shape: bf16[4,32,128], index: 12, kind: input, shape index: {}]
  %s13 = inlined_call_operand.vmem [shape: bf16[4,32,128], index: 13, kind: input, shape index: {}]
  %s14 = inlined_call_operand.vmem [shape: bf16[4,128,32], index: 14, kind: input, shape index: {}]
  %s15 = inlined_call_operand.vmem [shape: f32[16,32], index: 15, kind: output, shape index: {0}]
  %s16 = inlined_call_operand.vmem [shape: f32[16,4], index: 16, kind: output, shape index: {1}]
  %17 = xla_tuple %s15, %s16
  %s18 = sld [smem:[#allocation0]]
  $region105: #{model_forward.3} parent=0
    _
  %s20 = ssub.s32 1, %s18
  %s21 = scalar_select 0, %s20, %s18
  loop: start=0, step=1, limit=10
  $region2: #{model_forward.3} parent=0 // loop_pre_header
    _
  $region3: #{model_forward.3} parent=0 // loop_header
    %s23 = sphi 0, %s27
    %p24 = scmp.ge.s32.totalorder %s23, 10
    %s30 = sphi 0, %s42
    %s31 = sphi 0, %s38
    %s32 = sphi 0, %s30
    %s33 = sphi 0, %s31
    %s34 = sphi 0, %s32
    %s35 = sphi 0, %s33
    %s45 = sphi 0, %s47
    %s48 = sphi 0, %s45
    %s49 = sphi 0, %s48
    %s65 = sphi 0, %s49
    %s69 = sphi 0, %s69
    %s71 = sphi 0, %s69
    %s72 = sphi 0, %s71
    %s86 = sphi 0, %s72
    %s90 = sphi 0, %s90
    %s92 = sphi 0, %s90
    %s93 = sphi 0, %s92
    %s107 = sphi 0, %s93
    %s111 = sphi 0, %s111
    %s113 = sphi 0, %s111
    %s114 = sphi 0, %s113
    %s128 = sphi 0, %s114
    %s132 = sphi 0, %s132
    %s134 = sphi 0, %s132
    %s135 = sphi 0, %s134
    %s149 = sphi 0, %s135
    %s153 = sphi 0, %s153
    %s155 = sphi 0, %s153
    %s156 = sphi 0, %s155
    %s170 = sphi 0, %s156
    %s174 = sphi 0, %s174
    %s176 = sphi 0, %s174
    %s177 = sphi 0, %s176
    %s191 = sphi 0, %s177
    %s195 = sphi 0, %s195
    %s197 = sphi 0, %s195
    %s198 = sphi 0, %s197
    %s212 = sphi 0, %s198
    %s216 = sphi 0, %s216
    %s218 = sphi 0, %s216
    %s219 = sphi 0, %s218
    %s233 = sphi 0, %s219
    %s237 = sphi 0, %s237
    %s239 = sphi 0, %s237
    %s240 = sphi 0, %s239
    %s254 = sphi 0, %s240
    %s258 = sphi 0, %s258
    %s260 = sphi 0, %s258
    %s261 = sphi 0, %s260
    %s275 = sphi 0, %s261
    %s279 = sphi 0, %s279
    %s281 = sphi 0, %s279
    %s282 = sphi 0, %s281
    %s296 = sphi 0, %s282
    %s302 = sphi 0, %s304
    %s305 = sphi 0, %s302
    %s306 = sphi 0, %s305
    %s322 = sphi 0, %s306
    %s328 = sphi 0, %s330
    %s331 = sphi 0, %s328
    %s332 = sphi 0, %s331
    %s348 = sphi 0, %s332
    %s354 = sphi 0, %s356
    %s357 = sphi 0, %s354
    %s358 = sphi 0, %s357
    %s374 = sphi 0, %s358
    %s380 = sphi 0, %s382
    %s383 = sphi 0, %s380
    %s384 = sphi 0, %s383
    %s400 = sphi 0, %s384
    %s406 = sphi 0, %s408
    %s409 = sphi 0, %s406
    %s410 = sphi 0, %s409
    %s426 = sphi 0, %s410
  $region4: #{model_forward.3} parent=0 // loop_header_branch
    %26 = sbr.rel (%p24) target = $region8
  $region5: #{model_forward.3} parent=0 // loop_body
    %s28 = ssub.s32 %s23, 1
    %s29 = ssub.s32 %s23, 2
    %s36 = sadd.s32 1, %s31
    %p37 = scmp.ge.s32.totalorder %s36, 4
    %s38 = scalar_select %p37, 0, %s36
    %s39 = sadd.s32 1, %s30
    %s40 = scalar_select %p37, %s39, %s30
    %p41 = scmp.ge.s32.totalorder %s40, 2
    %s42 = scalar_select %p41, 0, %s40
    %s43 = ssub.s32 %s30, %s42
    %p44 = scmp.eq.s32.totalorder %s43, 0
    %s46 = sadd.s32 %s45, 1
    %s47 = scalar_select %p44, %s45, %s46
    %p50 = pneg %p44
    %p51 = scmp.eq.s32.totalorder %s23, 7
    %p52 = por %p50, %p51
    %p53 = scmp.ne.s32.totalorder %s45, %s48
    %p54 = scmp.eq.s32.totalorder %s23, 0
    %p55 = por %p53, %p54
    %p56 = scmp.ne.s32.totalorder %s45, %s48
    %p57 = scmp.eq.s32.totalorder %s28, 7
    %p58 = por %p56, %p57
    %p59 = scmp.ne.s32.totalorder %s48, %s49
    %p60 = scmp.eq.s32.totalorder %s28, 0
    %p61 = por %p59, %p60
    %p62 = scmp.ne.s32.totalorder %s48, %s49
    %p63 = scmp.eq.s32.totalorder %s29, 7
    %p64 = por %p62, %p63
    %p66 = scmp.ne.s32.totalorder %s49, %s65
    %p67 = scmp.eq.s32.totalorder %s29, 0
    %p68 = por %p66, %p67
    %s70 = sadd.s32 %s69, 1
    %p73 = scmp.eq.s32.totalorder %s23, 7
    %p74 = scmp.ne.s32.totalorder %s69, %s71
    %p75 = scmp.eq.s32.totalorder %s23, 0
    %p76 = por %p74, %p75
    %p77 = scmp.ne.s32.totalorder %s69, %s71
    %p78 = scmp.eq.s32.totalorder %s28, 7
    %p79 = por %p77, %p78
    %p80 = scmp.ne.s32.totalorder %s71, %s72
    %p81 = scmp.eq.s32.totalorder %s28, 0
    %p82 = por %p80, %p81
    %p83 = scmp.ne.s32.totalorder %s71, %s72
    %p84 = scmp.eq.s32.totalorder %s29, 7
    %p85 = por %p83, %p84
    %p87 = scmp.ne.s32.totalorder %s72, %s86
    %p88 = scmp.eq.s32.totalorder %s29, 0
    %p89 = por %p87, %p88
    %s91 = sadd.s32 %s90, 1
    %p94 = scmp.eq.s32.totalorder %s23, 7
    %p95 = scmp.ne.s32.totalorder %s90, %s92
    %p96 = scmp.eq.s32.totalorder %s23, 0
    %p97 = por %p95, %p96
    %p98 = scmp.ne.s32.totalorder %s90, %s92
    %p99 = scmp.eq.s32.totalorder %s28, 7
    %p100 = por %p98, %p99
    %p101 = scmp.ne.s32.totalorder %s92, %s93
    %p102 = scmp.eq.s32.totalorder %s28, 0
    %p103 = por %p101, %p102
    %p104 = scmp.ne.s32.totalorder %s92, %s93
    %p105 = scmp.eq.s32.totalorder %s29, 7
    %p106 = por %p104, %p105
    %p108 = scmp.ne.s32.totalorder %s93, %s107
    %p109 = scmp.eq.s32.totalorder %s29, 0
    %p110 = por %p108, %p109
    %s112 = sadd.s32 %s111, 1
    %p115 = scmp.eq.s32.totalorder %s23, 7
    %p116 = scmp.ne.s32.totalorder %s111, %s113
    %p117 = scmp.eq.s32.totalorder %s23, 0
    %p118 = por %p116, %p117
    %p119 = scmp.ne.s32.totalorder %s111, %s113
    %p120 = scmp.eq.s32.totalorder %s28, 7
    %p121 = por %p119, %p120
    %p122 = scmp.ne.s32.totalorder %s113, %s114
    %p123 = scmp.eq.s32.totalorder %s28, 0
    %p124 = por %p122, %p123
    %p125 = scmp.ne.s32.totalorder %s113, %s114
    %p126 = scmp.eq.s32.totalorder %s29, 7
    %p127 = por %p125, %p126
    %p129 = scmp.ne.s32.totalorder %s114, %s128
    %p130 = scmp.eq.s32.totalorder %s29, 0
    %p131 = por %p129, %p130
    %s133 = sadd.s32 %s132, 1
    %p136 = scmp.eq.s32.totalorder %s23, 7
    %p137 = scmp.ne.s32.totalorder %s132, %s134
    %p138 = scmp.eq.s32.totalorder %s23, 0
    %p139 = por %p137, %p138
    %p140 = scmp.ne.s32.totalorder %s132, %s134
    %p141 = scmp.eq.s32.totalorder %s28, 7
    %p142 = por %p140, %p141
    %p143 = scmp.ne.s32.totalorder %s134, %s135
    %p144 = scmp.eq.s32.totalorder %s28, 0
    %p145 = por %p143, %p144
    %p146 = scmp.ne.s32.totalorder %s134, %s135
    %p147 = scmp.eq.s32.totalorder %s29, 7
    %p148 = por %p146, %p147
    %p150 = scmp.ne.s32.totalorder %s135, %s149
    %p151 = scmp.eq.s32.totalorder %s29, 0
    %p152 = por %p150, %p151
    %s154 = sadd.s32 %s153, 1
    %p157 = scmp.eq.s32.totalorder %s23, 7
    %p158 = scmp.ne.s32.totalorder %s153, %s155
    %p159 = scmp.eq.s32.totalorder %s23, 0
    %p160 = por %p158, %p159
    %p161 = scmp.ne.s32.totalorder %s153, %s155
    %p162 = scmp.eq.s32.totalorder %s28, 7
    %p163 = por %p161, %p162
    %p164 = scmp.ne.s32.totalorder %s155, %s156
    %p165 = scmp.eq.s32.totalorder %s28, 0
    %p166 = por %p164, %p165
    %p167 = scmp.ne.s32.totalorder %s155, %s156
    %p168 = scmp.eq.s32.totalorder %s29, 7
    %p169 = por %p167, %p168
    %p171 = scmp.ne.s32.totalorder %s156, %s170
    %p172 = scmp.eq.s32.totalorder %s29, 0
    %p173 = por %p171, %p172
    %s175 = sadd.s32 %s174, 1
    %p178 = scmp.eq.s32.totalorder %s23, 7
    %p179 = scmp.ne.s32.totalorder %s174, %s176
    %p180 = scmp.eq.s32.totalorder %s23, 0
    %p181 = por %p179, %p180
    %p182 = scmp.ne.s32.totalorder %s174, %s176
    %p183 = scmp.eq.s32.totalorder %s28, 7
    %p184 = por %p182, %p183
    %p185 = scmp.ne.s32.totalorder %s176, %s177
    %p186 = scmp.eq.s32.totalorder %s28, 0
    %p187 = por %p185, %p186
    %p188 = scmp.ne.s32.totalorder %s176, %s177
    %p189 = scmp.eq.s32.totalorder %s29, 7
    %p190 = por %p188, %p189
    %p192 = scmp.ne.s32.totalorder %s177, %s191
    %p193 = scmp.eq.s32.totalorder %s29, 0
    %p194 = por %p192, %p193
    %s196 = sadd.s32 %s195, 1
    %p199 = scmp.eq.s32.totalorder %s23, 7
    %p200 = scmp.ne.s32.totalorder %s195, %s197
    %p201 = scmp.eq.s32.totalorder %s23, 0
    %p202 = por %p200, %p201
    %p203 = scmp.ne.s32.totalorder %s195, %s197
    %p204 = scmp.eq.s32.totalorder %s28, 7
    %p205 = por %p203, %p204
    %p206 = scmp.ne.s32.totalorder %s197, %s198
    %p207 = scmp.eq.s32.totalorder %s28, 0
    %p208 = por %p206, %p207
    %p209 = scmp.ne.s32.totalorder %s197, %s198
    %p210 = scmp.eq.s32.totalorder %s29, 7
    %p211 = por %p209, %p210
    %p213 = scmp.ne.s32.totalorder %s198, %s212
    %p214 = scmp.eq.s32.totalorder %s29, 0
    %p215 = por %p213, %p214
    %s217 = sadd.s32 %s216, 1
    %p220 = scmp.eq.s32.totalorder %s23, 7
    %p221 = scmp.ne.s32.totalorder %s216, %s218
    %p222 = scmp.eq.s32.totalorder %s23, 0
    %p223 = por %p221, %p222
    %p224 = scmp.ne.s32.totalorder %s216, %s218
    %p225 = scmp.eq.s32.totalorder %s28, 7
    %p226 = por %p224, %p225
    %p227 = scmp.ne.s32.totalorder %s218, %s219
    %p228 = scmp.eq.s32.totalorder %s28, 0
    %p229 = por %p227, %p228
    %p230 = scmp.ne.s32.totalorder %s218, %s219
    %p231 = scmp.eq.s32.totalorder %s29, 7
    %p232 = por %p230, %p231
    %p234 = scmp.ne.s32.totalorder %s219, %s233
    %p235 = scmp.eq.s32.totalorder %s29, 0
    %p236 = por %p234, %p235
    %s238 = sadd.s32 %s237, 1
    %p241 = scmp.eq.s32.totalorder %s23, 7
    %p242 = scmp.ne.s32.totalorder %s237, %s239
    %p243 = scmp.eq.s32.totalorder %s23, 0
    %p244 = por %p242, %p243
    %p245 = scmp.ne.s32.totalorder %s237, %s239
    %p246 = scmp.eq.s32.totalorder %s28, 7
    %p247 = por %p245, %p246
    %p248 = scmp.ne.s32.totalorder %s239, %s240
    %p249 = scmp.eq.s32.totalorder %s28, 0
    %p250 = por %p248, %p249
    %p251 = scmp.ne.s32.totalorder %s239, %s240
    %p252 = scmp.eq.s32.totalorder %s29, 7
    %p253 = por %p251, %p252
    %p255 = scmp.ne.s32.totalorder %s240, %s254
    %p256 = scmp.eq.s32.totalorder %s29, 0
    %p257 = por %p255, %p256
    %s259 = sadd.s32 %s258, 1
    %p262 = scmp.eq.s32.totalorder %s23, 7
    %p263 = scmp.ne.s32.totalorder %s258, %s260
    %p264 = scmp.eq.s32.totalorder %s23, 0
    %p265 = por %p263, %p264
    %p266 = scmp.ne.s32.totalorder %s258, %s260
    %p267 = scmp.eq.s32.totalorder %s28, 7
    %p268 = por %p266, %p267
    %p269 = scmp.ne.s32.totalorder %s260, %s261
    %p270 = scmp.eq.s32.totalorder %s28, 0
    %p271 = por %p269, %p270
    %p272 = scmp.ne.s32.totalorder %s260, %s261
    %p273 = scmp.eq.s32.totalorder %s29, 7
    %p274 = por %p272, %p273
    %p276 = scmp.ne.s32.totalorder %s261, %s275
    %p277 = scmp.eq.s32.totalorder %s29, 0
    %p278 = por %p276, %p277
    %s280 = sadd.s32 %s279, 1
    %p283 = scmp.eq.s32.totalorder %s23, 7
    %p284 = scmp.ne.s32.totalorder %s279, %s281
    %p285 = scmp.eq.s32.totalorder %s23, 0
    %p286 = por %p284, %p285
    %p287 = scmp.ne.s32.totalorder %s279, %s281
    %p288 = scmp.eq.s32.totalorder %s28, 7
    %p289 = por %p287, %p288
    %p290 = scmp.ne.s32.totalorder %s281, %s282
    %p291 = scmp.eq.s32.totalorder %s28, 0
    %p292 = por %p290, %p291
    %p293 = scmp.ne.s32.totalorder %s281, %s282
    %p294 = scmp.eq.s32.totalorder %s29, 7
    %p295 = por %p293, %p294
    %p297 = scmp.ne.s32.totalorder %s282, %s296
    %p298 = scmp.eq.s32.totalorder %s29, 0
    %p299 = por %p297, %p298
    %s300 = ssub.s32 %s31, %s38
    %p301 = scmp.eq.s32.totalorder %s300, 0
    %s303 = sadd.s32 %s302, 1
    %s304 = scalar_select %p301, %s302, %s303
    %p307 = pneg %p301
    %p308 = scmp.eq.s32.totalorder %s23, 7
    %p309 = por %p307, %p308
    %p310 = scmp.ne.s32.totalorder %s302, %s305
    %p311 = scmp.eq.s32.totalorder %s23, 0
    %p312 = por %p310, %p311
    %p313 = scmp.ne.s32.totalorder %s302, %s305
    %p314 = scmp.eq.s32.totalorder %s28, 7
    %p315 = por %p313, %p314
    %p316 = scmp.ne.s32.totalorder %s305, %s306
    %p317 = scmp.eq.s32.totalorder %s28, 0
    %p318 = por %p316, %p317
    %p319 = scmp.ne.s32.totalorder %s305, %s306
    %p320 = scmp.eq.s32.totalorder %s29, 7
    %p321 = por %p319, %p320
    %p323 = scmp.ne.s32.totalorder %s306, %s322
    %p324 = scmp.eq.s32.totalorder %s29, 0
    %p325 = por %p323, %p324
    %s326 = ssub.s32 %s31, %s38
    %p327 = scmp.eq.s32.totalorder %s326, 0
    %s329 = sadd.s32 %s328, 1
    %s330 = scalar_select %p327, %s328, %s329
    %p333 = pneg %p327
    %p334 = scmp.eq.s32.totalorder %s23, 7
    %p335 = por %p333, %p334
    %p336 = scmp.ne.s32.totalorder %s328, %s331
    %p337 = scmp.eq.s32.totalorder %s23, 0
    %p338 = por %p336, %p337
    %p339 = scmp.ne.s32.totalorder %s328, %s331
    %p340 = scmp.eq.s32.totalorder %s28, 7
    %p341 = por %p339, %p340
    %p342 = scmp.ne.s32.totalorder %s331, %s332
    %p343 = scmp.eq.s32.totalorder %s28, 0
    %p344 = por %p342, %p343
    %p345 = scmp.ne.s32.totalorder %s331, %s332
    %p346 = scmp.eq.s32.totalorder %s29, 7
    %p347 = por %p345, %p346
    %p349 = scmp.ne.s32.totalorder %s332, %s348
    %p350 = scmp.eq.s32.totalorder %s29, 0
    %p351 = por %p349, %p350
    %s352 = ssub.s32 %s31, %s38
    %p353 = scmp.eq.s32.totalorder %s352, 0
    %s355 = sadd.s32 %s354, 1
    %s356 = scalar_select %p353, %s354, %s355
    %p359 = pneg %p353
    %p360 = scmp.eq.s32.totalorder %s23, 7
    %p361 = por %p359, %p360
    %p362 = scmp.ne.s32.totalorder %s354, %s357
    %p363 = scmp.eq.s32.totalorder %s23, 0
    %p364 = por %p362, %p363
    %p365 = scmp.ne.s32.totalorder %s354, %s357
    %p366 = scmp.eq.s32.totalorder %s28, 7
    %p367 = por %p365, %p366
    %p368 = scmp.ne.s32.totalorder %s357, %s358
    %p369 = scmp.eq.s32.totalorder %s28, 0
    %p370 = por %p368, %p369
    %p371 = scmp.ne.s32.totalorder %s357, %s358
    %p372 = scmp.eq.s32.totalorder %s29, 7
    %p373 = por %p371, %p372
    %p375 = scmp.ne.s32.totalorder %s358, %s374
    %p376 = scmp.eq.s32.totalorder %s29, 0
    %p377 = por %p375, %p376
    %s378 = ssub.s32 %s30, %s42
    %p379 = scmp.eq.s32.totalorder %s378, 0
    %s381 = sadd.s32 %s380, 1
    %s382 = scalar_select %p379, %s380, %s381
    %p385 = pneg %p379
    %p386 = scmp.eq.s32.totalorder %s23, 7
    %p387 = por %p385, %p386
    %p388 = scmp.ne.s32.totalorder %s380, %s383
    %p389 = scmp.eq.s32.totalorder %s23, 0
    %p390 = por %p388, %p389
    %p391 = scmp.ne.s32.totalorder %s380, %s383
    %p392 = scmp.eq.s32.totalorder %s28, 7
    %p393 = por %p391, %p392
    %p394 = scmp.ne.s32.totalorder %s383, %s384
    %p395 = scmp.eq.s32.totalorder %s28, 0
    %p396 = por %p394, %p395
    %p397 = scmp.ne.s32.totalorder %s383, %s384
    %p398 = scmp.eq.s32.totalorder %s29, 7
    %p399 = por %p397, %p398
    %p401 = scmp.ne.s32.totalorder %s384, %s400
    %p402 = scmp.eq.s32.totalorder %s29, 0
    %p403 = por %p401, %p402
    %s404 = ssub.s32 %s30, %s42
    %p405 = scmp.eq.s32.totalorder %s404, 0
    %s407 = sadd.s32 %s406, 1
    %s408 = scalar_select %p405, %s406, %s407
    %p411 = pneg %p405
    %p412 = scmp.eq.s32.totalorder %s23, 7
    %p413 = por %p411, %p412
    %p414 = scmp.ne.s32.totalorder %s406, %s409
    %p415 = scmp.eq.s32.totalorder %s23, 0
    %p416 = por %p414, %p415
    %p417 = scmp.ne.s32.totalorder %s406, %s409
    %p418 = scmp.eq.s32.totalorder %s28, 7
    %p419 = por %p417, %p418
    %p420 = scmp.ne.s32.totalorder %s409, %s410
    %p421 = scmp.eq.s32.totalorder %s28, 0
    %p422 = por %p420, %p421
    %p423 = scmp.ne.s32.totalorder %s409, %s410
    %p424 = scmp.eq.s32.totalorder %s29, 7
    %p425 = por %p423, %p424
    %p427 = scmp.ne.s32.totalorder %s410, %s426
    %p428 = scmp.eq.s32.totalorder %s29, 0
    %p429 = por %p427, %p428
    %p430 = scmp.le.s32.totalorder 1, %s23
    %p431 = scmp.lt.s32.totalorder %s23, 9
    %p432 = pnand %p430, %p431
    %p433 = pneg %p432
    // Predicated region
    $region9: #{model_forward.3} parent=5 // pred_check
      _
    $region10: #{model_forward.3} parent=5 // pred_check_branch
      %435 = sbr.rel (%p432) target = $region12
    $region11: #{model_forward.3} parent=5 // pred_region
      %s436 = ssub.s32 %s23, 1
      // Predicated region
      $region13: #{model_forward.3} parent=11 // pred_check
        %p437 = pneg %p82
      $region14: #{model_forward.3} parent=11 // pred_check_branch
        %439 = sbr.rel (%p437) target = $region16
      $region15: #{model_forward.3} parent=11 // pred_region
        _
      $region16: #{model_forward.3} parent=11 // pred_fallthru
        _
      // Predicated region
      $region17: #{model_forward.3} parent=11 // pred_check
        %p440 = pneg %p103
      $region18: #{model_forward.3} parent=11 // pred_check_branch
        %442 = sbr.rel (%p440) target = $region20
      $region19: #{model_forward.3} parent=11 // pred_region
        _
      $region20: #{model_forward.3} parent=11 // pred_fallthru
        _
      // Predicated region
      $region21: #{model_forward.3} parent=11 // pred_check
        %p443 = pneg %p124
      $region22: #{model_forward.3} parent=11 // pred_check_branch
        %445 = sbr.rel (%p443) target = $region24
      $region23: #{model_forward.3} parent=11 // pred_region
        _
      $region24: #{model_forward.3} parent=11 // pred_fallthru
        _
      // Predicated region
      $region25: #{model_forward.3} parent=11 // pred_check
        %p446 = pneg %p145
      $region26: #{model_forward.3} parent=11 // pred_check_branch
        %448 = sbr.rel (%p446) target = $region28
      $region27: #{model_forward.3} parent=11 // pred_region
        _
      $region28: #{model_forward.3} parent=11 // pred_fallthru
        _
      // Predicated region
      $region29: #{model_forward.3} parent=11 // pred_check
        %p449 = pneg %p166
      $region30: #{model_forward.3} parent=11 // pred_check_branch
        %451 = sbr.rel (%p449) target = $region32
      $region31: #{model_forward.3} parent=11 // pred_region
        _
      $region32: #{model_forward.3} parent=11 // pred_fallthru
        _
      // Predicated region
      $region33: #{model_forward.3} parent=11 // pred_check
        %p452 = pneg %p187
      $region34: #{model_forward.3} parent=11 // pred_check_branch
        %454 = sbr.rel (%p452) target = $region36
      $region35: #{model_forward.3} parent=11 // pred_region
        _
      $region36: #{model_forward.3} parent=11 // pred_fallthru
        _
      // Predicated region
      $region37: #{model_forward.3} parent=11 // pred_check
        %p455 = pneg %p208
      $region38: #{model_forward.3} parent=11 // pred_check_branch
        %457 = sbr.rel (%p455) target = $region40
      $region39: #{model_forward.3} parent=11 // pred_region
        _
      $region40: #{model_forward.3} parent=11 // pred_fallthru
        _
      // Predicated region
      $region41: #{model_forward.3} parent=11 // pred_check
        %p458 = pneg %p229
      $region42: #{model_forward.3} parent=11 // pred_check_branch
        %460 = sbr.rel (%p458) target = $region44
      $region43: #{model_forward.3} parent=11 // pred_region
        _
      $region44: #{model_forward.3} parent=11 // pred_fallthru
        _
      // Predicated region
      $region45: #{model_forward.3} parent=11 // pred_check
        %p461 = pneg %p250
      $region46: #{model_forward.3} parent=11 // pred_check_branch
        %463 = sbr.rel (%p461) target = $region48
      $region47: #{model_forward.3} parent=11 // pred_region
        _
      $region48: #{model_forward.3} parent=11 // pred_fallthru
        _
      // Predicated region
      $region49: #{model_forward.3} parent=11 // pred_check
        %p464 = pneg %p271
      $region50: #{model_forward.3} parent=11 // pred_check_branch
        %466 = sbr.rel (%p464) target = $region52
      $region51: #{model_forward.3} parent=11 // pred_region
        _
      $region52: #{model_forward.3} parent=11 // pred_fallthru
        _
      // Predicated region
      $region53: #{model_forward.3} parent=11 // pred_check
        %p467 = pneg %p292
      $region54: #{model_forward.3} parent=11 // pred_check_branch
        %469 = sbr.rel (%p467) target = $region56
      $region55: #{model_forward.3} parent=11 // pred_region
        _
      $region56: #{model_forward.3} parent=11 // pred_fallthru
        _
    $region12: #{model_forward.3} parent=5 // pred_fallthru
      _
    %p470 = scmp.lt.s32.totalorder %s23, 8
    // Predicated region
    $region57: #{model_forward.3} parent=5 // pred_check
      %p471 = pneg %p470
    $region58: #{model_forward.3} parent=5 // pred_check_branch
      %473 = sbr.rel (%p471) target = $region60
    $region59: #{model_forward.3} parent=5 // pred_region
      // Predicated region
      $region61: #{model_forward.3} parent=59 // pred_check
        %p474 = pneg %p55
      $region62: #{model_forward.3} parent=59 // pred_check_branch
        %476 = sbr.rel (%p474) target = $region64
      $region63: #{model_forward.3} parent=59 // pred_region
        %p477 = scmp.lt.s32.totalorder %s30, 1
        %s478 = scalar_select %p477, %s30, 1
        %s479 = smul.addr %s478, 8
        %s480 = scalar_lea.vmem %s0, %s479
      $region64: #{model_forward.3} parent=59 // pred_fallthru
        _
      // Predicated region
      $region65: #{model_forward.3} parent=59 // pred_check
        %p481 = pneg %p312
      $region66: #{model_forward.3} parent=59 // pred_check_branch
        %483 = sbr.rel (%p481) target = $region68
      $region67: #{model_forward.3} parent=59 // pred_region
        %p484 = scmp.lt.s32.totalorder %s31, 3
        %s485 = scalar_select %p484, %s31, 3
        %s486 = smul.addr %s485, 4
        %s487 = smul.addr %s486, 4
        %s488 = scalar_lea.vmem %s12, %s487
      $region68: #{model_forward.3} parent=59 // pred_fallthru
        _
      // Predicated region
      $region69: #{model_forward.3} parent=59 // pred_check
        %p489 = pneg %p338
      $region70: #{model_forward.3} parent=59 // pred_check_branch
        %491 = sbr.rel (%p489) target = $region72
      $region71: #{model_forward.3} parent=59 // pred_region
        %p492 = scmp.lt.s32.totalorder %s31, 3
        %s493 = scalar_select %p492, %s31, 3
        %s494 = smul.addr %s493, 4
        %s495 = smul.addr %s494, 4
        %s496 = scalar_lea.vmem %s13, %s495
      $region72: #{model_forward.3} parent=59 // pred_fallthru
        _
      // Predicated region
      $region73: #{model_forward.3} parent=59 // pred_check
        %p497 = pneg %p364
      $region74: #{model_forward.3} parent=59 // pred_check_branch
        %499 = sbr.rel (%p497) target = $region76
      $region75: #{model_forward.3} parent=59 // pred_region
        %p500 = scmp.lt.s32.totalorder %s31, 3
        %s501 = scalar_select %p500, %s31, 3
        %s502 = smul.addr %s501, 16
        %s503 = smul.addr %s502, 4
        %s504 = scalar_lea.vmem %s14, %s503
      $region76: #{model_forward.3} parent=59 // pred_fallthru
        _
    $region60: #{model_forward.3} parent=5 // pred_fallthru
      _
    %p505 = scmp.le.s32.totalorder 1, %s23
    %p506 = scmp.lt.s32.totalorder %s23, 9
    %p507 = pnand %p505, %p506
    %p508 = pneg %p507
    // Predicated region
    $region77: #{model_forward.3} parent=5 // pred_check
      _
    $region78: #{model_forward.3} parent=5 // pred_check_branch
      %510 = sbr.rel (%p507) target = $region80
    $region79: #{model_forward.3} parent=5 // pred_region
      %s511 = ssub.s32 %s23, 1
      %p512 = scmp.lt.s32.totalorder %s32, 1
      %s513 = scalar_select %p512, %s32, 1
      %s514 = smul.addr %s513, 8
      %s515 = scalar_lea.vmem %s0, %s514
      %p516 = pneg %p61
      %p517 = pneg %p58
      %p518 = pneg %p82
      %p519 = pneg %p79
      %p520 = pneg %p103
      %p521 = pneg %p100
      %p522 = pneg %p124
      %p523 = pneg %p121
      %p524 = pneg %p145
      %p525 = pneg %p142
      %p526 = pneg %p166
      %p527 = pneg %p163
      %p528 = pneg %p187
      %p529 = pneg %p184
      %p530 = pneg %p208
      %p531 = pneg %p205
      %p532 = pneg %p229
      %p533 = pneg %p226
      %p534 = pneg %p250
      %p535 = pneg %p247
      %p536 = pneg %p271
      %p537 = pneg %p268
      %p538 = pneg %p292
      %p539 = pneg %p289
      %p540 = scmp.lt.s32.totalorder %s33, 3
      %s541 = scalar_select %p540, %s33, 3
      %s542 = smul.addr %s541, 4
      %s543 = smul.addr %s542, 4
      %s544 = scalar_lea.vmem %s12, %s543
      %p545 = pneg %p318
      %p546 = pneg %p315
      %p547 = scmp.lt.s32.totalorder %s33, 3
      %s548 = scalar_select %p547, %s33, 3
      %s549 = smul.addr %s548, 4
      %s550 = smul.addr %s549, 4
      %s551 = scalar_lea.vmem %s13, %s550
      %p552 = pneg %p344
      %p553 = pneg %p341
      %p554 = scmp.lt.s32.totalorder %s33, 3
      %s555 = scalar_select %p554, %s33, 3
      %s556 = smul.addr %s555, 16
      %s557 = smul.addr %s556, 4
      %s558 = scalar_lea.vmem %s14, %s557
      %p559 = pneg %p370
      %p560 = pneg %p367
      %p561 = pneg %p396
      %p562 = pneg %p393
      %p563 = scmp.lt.s32.totalorder %s32, 1
      %s564 = scalar_select %p563, %s32, 1
      %s565 = smul.addr %s564, 8
      %s566 = scalar_lea.vmem %s15, %s565
      %p567 = pneg %p422
      %p568 = pneg %p419
      %p569 = scmp.lt.s32.totalorder %s32, 1
      %s570 = scalar_select %p569, %s32, 1
      %s571 = smul.addr %s570, 8
      %s572 = scalar_lea.vmem %s16, %s571
      %p573 = scmp.lt.s32.totalorder %s32, 1
      %s574 = scalar_select %p573, %s32, 1
      %s575 = smul.addr %s574, 8
      %s576 = scalar_lea.vmem %s0, %s575
      %p577 = scmp.lt.s32.totalorder %s33, 3
      %s578 = scalar_select %p577, %s33, 3
      %s579 = smul.addr %s578, 4
      %s580 = smul.addr %s579, 4
      %s581 = scalar_lea.vmem %s12, %s580
      %p582 = scmp.lt.s32.totalorder %s33, 3
      %s583 = scalar_select %p582, %s33, 3
      %s584 = smul.addr %s583, 4
      %s585 = smul.addr %s584, 4
      %s586 = scalar_lea.vmem %s13, %s585
      %p587 = scmp.lt.s32.totalorder %s33, 3
      %s588 = scalar_select %p587, %s33, 3
      %s589 = smul.addr %s588, 16
      %s590 = smul.addr %s589, 4
      %s591 = scalar_lea.vmem %s14, %s590
      %p592 = scmp.lt.s32.totalorder %s32, 1
      %s593 = scalar_select %p592, %s32, 1
      %s594 = smul.addr %s593, 8
      %s595 = scalar_lea.vmem %s15, %s594
      %p596 = scmp.lt.s32.totalorder %s32, 1
      %s597 = scalar_select %p596, %s32, 1
      %s598 = smul.addr %s597, 8
      %s599 = scalar_lea.vmem %s16, %s598
      %p601 = scmp.eq.s32.totalorder %s33, 0
      // Predicated region
      $region81: #{model_forward.3} parent=79 // pred_check
        %p602 = pneg %p601
      $region82: #{model_forward.3} parent=79 // pred_check_branch
        %604 = sbr.rel (%p602) target = $region84
      $region83: #{model_forward.3} parent=79 // pred_region
        %v605 = vld [vmem:[%s576] sm:$0xff]
        %v606 = vld [vmem:[%s1] sm:$0x1]
        %v607 = vld [vmem:[%s2] sm:$0x1]
        %vm608 = vcmask 261120
        %v609 = vsel %vm608, %v605, 0.0
        %610 = vadd.xlane.f32.xlu0 %v609
        %v611 = vpop.xlane.xlu0 %610
        %v612 = vrcp.pop 32.0
        %v613 = vmul.f32 %v611, %v612
        %v614 = vsub.f32 %v605, %v613
        %v615 = vmul.f32 %v614, %v614
        %v616 = vsel %vm608, %v615, 0.0
        %617 = vadd.xlane.f32.xlu0 %v616
        %v618 = vpop.xlane.xlu0 %617
        %v619 = vmul.f32 %v618, %v612
        %v620 = vadd.f32 %v619, 1e-05
        %v621 = vrsqrt.pop %v620
        %v622 = vmul.f32 %v614, %v621
        %v624 = vlaneseq
        %v625 = vshrl.u32 %v624, 7
        %v626 = vsub.s32 0, %v625
        %v627 = vrot.slane %v606, %v626
        %v629 = vmul.f32 %v622, %v627
        %v631 = vlaneseq
        %v632 = vshrl.u32 %v631, 7
        %v633 = vsub.s32 0, %v632
        %v634 = vrot.slane %v607, %v633
        %v636 = vadd.f32 %v629, %v634
        %v637 = vpack.c.bf16 %v636, %v636
        %v638 = vld [vmem:[%s3] sm:$0xf]
        %v639 = vld [vmem:[%s3 + $0x4] sm:$0xf]
        %v640 = vld [vmem:[%s3 + $0x8] sm:$0xf]
        %v641 = vld [vmem:[%s3 + $0xc] sm:$0xf]
        %v642 = vld [vmem:[%s4] sm:$0x1]
        %v644 = vlaneseq
        %v645 = vshrl.u32 %v644, 7
        %v646 = vsub.s32 0, %v645
        %v647 = vrot.slane %v642, %v646
        %v653 = vunpack.c.l.b16 %v638
        %v654 = vunpack.c.l.b16 %v639
        %v655 = vunpack.c.l.b16 %v640
        %v656 = vunpack.c.l.b16 %v641
        %v657 = vpack.c.b16 %v654, %v653
        %v658 = vpack.c.b16 %v656, %v655
        %v662 = vsel %vm608, %v637, 0
        %664 = vmatprep.subr.bf16.mxu0 0
        %665 = vmatpush1.bf16.msra.mxu0 %v657
        %666 = vmatprep.subr.bf16.mxu0 0
        %667 = vmatpush1.bf16.msra.mxu0 %v658
        %668 = vmatprep.subr.bf16.mxu0 0
        %669 = vmatpush1.bf16.msra.mxu0 0
        %670 = vmatprep.subr.bf16.mxu0 0
        %671 = vmatpush1.bf16.msra.mxu0 0
        %672 = vmatprep.subr.bf16.mxu0 0
        %673 = vmatpush1.bf16.msra.mxu0 0
        %674 = vmatprep.subr.bf16.mxu0 0
        %675 = vmatpush1.bf16.msra.mxu0 0
        %676 = vmatprep.subr.bf16.mxu0 0
        %677 = vmatpush1.bf16.msra.mxu0 0
        %678 = vmatprep.subr.bf16.mxu0 0
        %679 = vmatpush1.bf16.msra.mxu0 0
        %680 = vmatprep.subr.bf16.mxu0 0
        %681 = vmatpush1.bf16.msra.mxu0 0
        %682 = vmatprep.subr.bf16.mxu0 0
        %683 = vmatpush1.bf16.msra.mxu0 0
        %684 = vmatprep.subr.bf16.mxu0 0
        %685 = vmatpush1.bf16.msra.mxu0 0
        %686 = vmatprep.subr.bf16.mxu0 0
        %687 = vmatpush1.bf16.msra.mxu0 0
        %688 = vmatprep.subr.bf16.mxu0 0
        %689 = vmatpush1.bf16.msra.mxu0 0
        %690 = vmatprep.subr.bf16.mxu0 0
        %691 = vmatpush1.bf16.msra.mxu0 0
        %692 = vmatprep.subr.bf16.mxu0 0
        %693 = vmatpush1.bf16.msra.mxu0 0
        %694 = vmatprep.subr.bf16.mxu0 0
        %695 = vmatpush1.bf16.msra.mxu0 0
        %696 = vmatprep.mubr.bf16.mxu0 0
        %697 = vmatmul.mubr.bf16.gmra.mrb[0].mxu0 %v662
        %v698 = vpop.f32.mrb[0].mxu0
        %v699 = vadd.f32 %v647, %v698
        %v700 = vpop.f32.mrb[0].mxu0
        %v701 = vpop.f32.mrb[0].mxu0
        %v702 = vpop.f32.mrb[0].mxu0
        %703 = vdwg.mxu0
        %v704 = vld [vmem:[%s5] sm:$0xff]
        %v705 = vld [vmem:[%s6] sm:$0xff]
        %v706 = vlaneseq
        %v707 = vand.u32 %v706, 127
        %vm708 = vcmp.lt.s32.totalorder %v707, 0
        %v709 = vsub.s32 0, %v707
        %v710 = vsel %vm708, %v709, %v707
        %v711 = vshrl.u32 %v710, 1
        %v712 = vand.u32 %v710, 1
        %v713 = vsub.s32 0, %v712
        %v714 = vsel %vm708, %v713, %v712
        %vm715 = vcmp.ne.s32.totalorder %v714, 0
        %vm716 = vcmp.lt.s32.totalorder %v714, 0
        %vm717 = vmand %vm716, %vm715
        %v718 = vadd.s32 %v714, 2
        %v719 = vsel %vm717, %v718, %v714
        %vm720 = vcmp.eq.s32.totalorder %v719, 0
        %vm721 = vcmask 1047808
        %722 = vrot.lane.b32.xlu0 %v699, 32
        %v723 = vpop.permute.xlu0 %722
        %v724 = vsel %vm721, %v723, %v699
        %725 = vrot.lane.b32.xlu0 %v724, 32
        %v726 = vpop.permute.xlu0 %725
        %v727 = vsel %vm721, %v726, %v699
        %729 = vrot.lane.b32.xlu0 %v727, 127
        %v730 = vpop.permute.xlu0 %729
        %732 = vrot.lane.b32.xlu0 %v727, 97
        %v733 = vpop.permute.xlu0 %732
        %v735 = vsel %vm720, %v730, %v733
        %v736 = vmul.f32 %v699, %v704
        %v737 = vmul.f32 %v735, %v705
        %v738 = vadd.f32 %v736, %v737
        %740 = vrot.lane.b32.xlu0 %v699, 96
        %v741 = vpop.permute.xlu0 %740
        %743 = vrot.lane.b32.xlu0 %v741, 32
        %v744 = vpop.permute.xlu0 %743
        %v745 = vsel %vm721, %v744, %v741
        %746 = vrot.lane.b32.xlu0 %v745, 32
        %v747 = vpop.permute.xlu0 %746
        %v748 = vsel %vm721, %v747, %v741
        %750 = vrot.lane.b32.xlu0 %v748, 127
        %v751 = vpop.permute.xlu0 %750
        %753 = vrot.lane.b32.xlu0 %v748, 97
        %v754 = vpop.permute.xlu0 %753
        %v756 = vsel %vm720, %v751, %v754
        %758 = vrot.lane.b32.xlu0 %v704, 32
        %v759 = vpop.permute.xlu0 %758
        %v761 = vmul.f32 %v699, %v759
        %v762 = vmul.f32 %v756, %v705
        %764 = vrot.lane.b32.xlu0 %v762, 32
        %v765 = vpop.permute.xlu0 %764
        %v767 = vadd.f32 %v761, %v765
        %v768 = vlaneseq
        %v769 = vshrl.u32 %v768, 7
        %vm770 = vcmp.ge.s32.totalorder %v769, %v707
        %v771 = vpack.c.bf16 %v738, %v738
        %v772 = vpack.c.bf16 %v767, %v767
        %v773 = vpack.c.bf16 %v699, %v699
        %775 = vrot.lane.b32.xlu0 %v772, 96
        %v776 = vpop.permute.xlu0 %775
        %vm777 = vcmask 64512
        %v779 = vsel %vm777, %v771, 0
        %v782 = vsel %vm777, %v776, 0
        %784 = vmatprep.subr.bf16.mxu0 0
        %785 = vmatpush1.bf16.xpose.msra.mxu0 %v782
        %786 = vmatprep.subr.bf16.mxu0 0
        %787 = vmatpush1.bf16.xpose.msra.mxu0 0
        %788 = vmatprep.subr.bf16.mxu0 0
        %789 = vmatpush1.bf16.xpose.msra.mxu0 0
        %790 = vmatprep.subr.bf16.mxu0 0
        %791 = vmatpush1.bf16.xpose.msra.mxu0 0
        %792 = vmatprep.subr.bf16.mxu0 0
        %793 = vmatpush1.bf16.xpose.msra.mxu0 0
        %794 = vmatprep.subr.bf16.mxu0 0
        %795 = vmatpush1.bf16.xpose.msra.mxu0 0
        %796 = vmatprep.subr.bf16.mxu0 0
        %797 = vmatpush1.bf16.xpose.msra.mxu0 0
        %798 = vmatprep.subr.bf16.mxu0 0
        %799 = vmatpush1.bf16.xpose.msra.mxu0 0
        %800 = vmatprep.subr.bf16.mxu0 0
        %801 = vmatpush1.bf16.xpose.msra.mxu0 0
        %802 = vmatprep.subr.bf16.mxu0 0
        %803 = vmatpush1.bf16.xpose.msra.mxu0 0
        %804 = vmatprep.subr.bf16.mxu0 0
        %805 = vmatpush1.bf16.xpose.msra.mxu0 0
        %806 = vmatprep.subr.bf16.mxu0 0
        %807 = vmatpush1.bf16.xpose.msra.mxu0 0
        %808 = vmatprep.subr.bf16.mxu0 0
        %809 = vmatpush1.bf16.xpose.msra.mxu0 0
        %810 = vmatprep.subr.bf16.mxu0 0
        %811 = vmatpush1.bf16.xpose.msra.mxu0 0
        %812 = vmatprep.subr.bf16.mxu0 0
        %813 = vmatpush1.bf16.xpose.msra.mxu0 0
        %814 = vmatprep.subr.bf16.mxu0 0
        %815 = vmatpush1.bf16.xpose.msra.mxu0 0
        %816 = vmatprep.mubr.bf16.mxu0 0
        %817 = vmatmul.mubr.bf16.gmra.mrb[0].mxu0 %v779
        %v818 = vpop.f32.mrb[0].mxu0
        %v819 = vadd.f32 0.0, %v818
        %v820 = vpop.f32.mrb[0].mxu0
        %v821 = vpop.f32.mrb[0].mxu0
        %v822 = vpop.f32.mrb[0].mxu0
        %823 = vdwg.mxu0
        %v824 = vmul.f32 %v819, 0.35355338
        %v825 = vsel %vm770, %v824, -1e+30
        %v826 = vsel %vm777, %v825, -inf
        %827 = vmax.xlane.f32.xlu0 %v826
        %v828 = vpop.xlane.xlu0 %827
        %v829 = vsub.f32 %v825, %v828
        %v830 = vmul.f32 %v829, 1.442695
        %v831 = vpow.pop %v830
        %v832 = vsel %vm777, %v831, 0.0
        %833 = vadd.xlane.f32.xlu0 %v832
        %v834 = vpop.xlane.xlu0 %833
        %v835 = vrcp.pop %v834
        %v836 = vmul.f32 %v831, %v835
        %v837 = vpack.c.bf16 %v836, %v836
        %839 = vrot.lane.b32.xlu0 %v773, 64
        %v840 = vpop.permute.xlu0 %839
        %v842 = vsel %vm777, %v837, 0
        %vm844 = vcmask 1043456
        %v846 = vsel %vm844, %v840, 0
        %848 = vmatprep.subr.bf16.mxu0 0
        %849 = vmatpush1.bf16.msra.mxu0 %v846
        %850 = vmatprep.subr.bf16.mxu0 0
        %851 = vmatpush1.bf16.msra.mxu0 0
        %852 = vmatprep.subr.bf16.mxu0 0
        %853 = vmatpush1.bf16.msra.mxu0 0
        %854 = vmatprep.subr.bf16.mxu0 0
        %855 = vmatpush1.bf16.msra.mxu0 0
        %856 = vmatprep.subr.bf16.mxu0 0
        %857 = vmatpush1.bf16.msra.mxu0 0
        %858 = vmatprep.subr.bf16.mxu0 0
        %859 = vmatpush1.bf16.msra.mxu0 0
        %860 = vmatprep.subr.bf16.mxu0 0
        %861 = vmatpush1.bf16.msra.mxu0 0
        %862 = vmatprep.subr.bf16.mxu0 0
        %863 = vmatpush1.bf16.msra.mxu0 0
        %864 = vmatprep.subr.bf16.mxu0 0
        %865 = vmatpush1.bf16.msra.mxu0 0
        %866 = vmatprep.subr.bf16.mxu0 0
        %867 = vmatpush1.bf16.msra.mxu0 0
        %868 = vmatprep.subr.bf16.mxu0 0
        %869 = vmatpush1.bf16.msra.mxu0 0
        %870 = vmatprep.subr.bf16.mxu0 0
        %871 = vmatpush1.bf16.msra.mxu0 0
        %872 = vmatprep.subr.bf16.mxu0 0
        %873 = vmatpush1.bf16.msra.mxu0 0
        %874 = vmatprep.subr.bf16.mxu0 0
        %875 = vmatpush1.bf16.msra.mxu0 0
        %876 = vmatprep.subr.bf16.mxu0 0
        %877 = vmatpush1.bf16.msra.mxu0 0
        %878 = vmatprep.subr.bf16.mxu0 0
        %879 = vmatpush1.bf16.msra.mxu0 0
        %880 = vmatprep.mubr.bf16.mxu0 0
        %881 = vmatmul.mubr.bf16.gmra.mrb[0].mxu0 %v842
        %v882 = vpop.f32.mrb[0].mxu0
        %v883 = vadd.f32 0.0, %v882
        %v884 = vpop.f32.mrb[0].mxu0
        %v885 = vpop.f32.mrb[0].mxu0
        %v886 = vpop.f32.mrb[0].mxu0
        %887 = vdwg.mxu0
        %889 = vrot.lane.b32.xlu0 %v771, 120
        %v890 = vpop.permute.xlu0 %889
        %891 = vrot.lane.b32.xlu0 %v772, 88
        %v892 = vpop.permute.xlu0 %891
        %v894 = vsel %vm777, %v890, 0
        %v897 = vsel %vm777, %v892, 0
        %899 = vmatprep.subr.bf16.mxu0 0
        %900 = vmatpush1.bf16.xpose.msra.mxu0 %v897
        %901 = vmatprep.subr.bf16.mxu0 0
        %902 = vmatpush1.bf16.xpose.msra.mxu0 0
        %903 = vmatprep.subr.bf16.mxu0 0
        %904 = vmatpush1.bf16.xpose.msra.mxu0 0
        %905 = vmatprep.subr.bf16.mxu0 0
        %906 = vmatpush1.bf16.xpose.msra.mxu0 0
        %907 = vmatprep.subr.bf16.mxu0 0
        %908 = vmatpush1.bf16.xpose.msra.mxu0 0
        %909 = vmatprep.subr.bf16.mxu0 0
        %910 = vmatpush1.bf16.xpose.msra.mxu0 0
        %911 = vmatprep.subr.bf16.mxu0 0
        %912 = vmatpush1.bf16.xpose.msra.mxu0 0
        %913 = vmatprep.subr.bf16.mxu0 0
        %914 = vmatpush1.bf16.xpose.msra.mxu0 0
        %915 = vmatprep.subr.bf16.mxu0 0
        %916 = vmatpush1.bf16.xpose.msra.mxu0 0
        %917 = vmatprep.subr.bf16.mxu0 0
        %918 = vmatpush1.bf16.xpose.msra.mxu0 0
        %919 = vmatprep.subr.bf16.mxu0 0
        %920 = vmatpush1.bf16.xpose.msra.mxu0 0
        %921 = vmatprep.subr.bf16.mxu0 0
        %922 = vmatpush1.bf16.xpose.msra.mxu0 0
        %923 = vmatprep.subr.bf16.mxu0 0
        %924 = vmatpush1.bf16.xpose.msra.mxu0 0
        %925 = vmatprep.subr.bf16.mxu0 0
        %926 = vmatpush1.bf16.xpose.msra.mxu0 0
        %927 = vmatprep.subr.bf16.mxu0 0
        %928 = vmatpush1.bf16.xpose.msra.mxu0 0
        %929 = vmatprep.subr.bf16.mxu0 0
        %930 = vmatpush1.bf16.xpose.msra.mxu0 0
        %931 = vmatprep.mubr.bf16.mxu0 0
        %932 = vmatmul.mubr.bf16.gmra.mrb[0].mxu0 %v894
        %v933 = vpop.f32.mrb[0].mxu0
        %v934 = vadd.f32 0.0, %v933
        %v935 = vpop.f32.mrb[0].mxu0
        %v936 = vpop.f32.mrb[0].mxu0
        %v937 = vpop.f32.mrb[0].mxu0
        %938 = vdwg.mxu0
        %v939 = vmul.f32 %v934, 0.35355338
        %v940 = vsel %vm770, %v939, -1e+30
        %v941 = vsel %vm777, %v940, -inf
        %942 = vmax.xlane.f32.xlu0 %v941
        %v943 = vpop.xlane.xlu0 %942
        %v944 = vsub.f32 %v940, %v943
        %v945 = vmul.f32 %v944, 1.442695
        %v946 = vpow.pop %v945
        %v947 = vsel %vm777, %v946, 0.0
        %948 = vadd.xlane.f32.xlu0 %v947
        %v949 = vpop.xlane.xlu0 %948
        %v950 = vrcp.pop %v949
        %v951 = vmul.f32 %v946, %v950
        %v952 = vpack.c.bf16 %v951, %v951
        %953 = vrot.lane.b32.xlu0 %v773, 56
        %v954 = vpop.permute.xlu0 %953
        %v956 = vsel %vm777, %v952, 0
        %v959 = vsel %vm844, %v954, 0
        %961 = vmatprep.subr.bf16.mxu0 0
        %962 = vmatpush1.bf16.msra.mxu0 %v959
        %963 = vmatprep.subr.bf16.mxu0 0
        %964 = vmatpush1.bf16.msra.mxu0 0
        %965 = vmatprep.subr.bf16.mxu0 0
        %966 = vmatpush1.bf16.msra.mxu0 0
        %967 = vmatprep.subr.bf16.mxu0 0
        %968 = vmatpush1.bf16.msra.mxu0 0
        %969 = vmatprep.subr.bf16.mxu0 0
        %970 = vmatpush1.bf16.msra.mxu0 0
        %971 = vmatprep.subr.bf16.mxu0 0
        %972 = vmatpush1.bf16.msra.mxu0 0
        %973 = vmatprep.subr.bf16.mxu0 0
        %974 = vmatpush1.bf16.msra.mxu0 0
        %975 = vmatprep.subr.bf16.mxu0 0
        %976 = vmatpush1.bf16.msra.mxu0 0
        %977 = vmatprep.subr.bf16.mxu0 0
        %978 = vmatpush1.bf16.msra.mxu0 0
        %979 = vmatprep.subr.bf16.mxu0 0
        %980 = vmatpush1.bf16.msra.mxu0 0
        %981 = vmatprep.subr.bf16.mxu0 0
        %982 = vmatpush1.bf16.msra.mxu0 0
        %983 = vmatprep.subr.bf16.mxu0 0
        %984 = vmatpush1.bf16.msra.mxu0 0
        %985 = vmatprep.subr.bf16.mxu0 0
        %986 = vmatpush1.bf16.msra.mxu0 0
        %987 = vmatprep.subr.bf16.mxu0 0
        %988 = vmatpush1.bf16.msra.mxu0 0
        %989 = vmatprep.subr.bf16.mxu0 0
        %990 = vmatpush1.bf16.msra.mxu0 0
        %991 = vmatprep.subr.bf16.mxu0 0
        %992 = vmatpush1.bf16.msra.mxu0 0
        %993 = vmatprep.mubr.bf16.mxu0 0
        %994 = vmatmul.mubr.bf16.gmra.mrb[0].mxu0 %v956
        %v995 = vpop.f32.mrb[0].mxu0
        %v996 = vadd.f32 0.0, %v995
        %v997 = vpop.f32.mrb[0].mxu0
        %v998 = vpop.f32.mrb[0].mxu0
        %v999 = vpop.f32.mrb[0].mxu0
        %1000 = vdwg.mxu0
        %1001 = vrot.lane.b32.xlu0 %v771, 112
        %v1002 = vpop.permute.xlu0 %1001
        %1003 = vrot.lane.b32.xlu0 %v772, 80
        %v1004 = vpop.permute.xlu0 %1003
        %v1006 = vsel %vm777, %v1002, 0
        %v1009 = vsel %vm777, %v1004, 0
        %1011 = vmatprep.subr.bf16.mxu0 0
        %1012 = vmatpush1.bf16.xpose.msra.mxu0 %v1009
        %1013 = vmatprep.subr.bf16.mxu0 0
        %1014 = vmatpush1.bf16.xpose.msra.mxu0 0
        %1015 = vmatprep.subr.bf16.mxu0 0
        %1016 = vmatpush1.bf16.xpose.msra.mxu0 0
        %1017 = vmatprep.subr.bf16.mxu0 0
        %1018 = vmatpush1.bf16.xpose.msra.mxu0 0
        %1019 = vmatprep.subr.bf16.mxu0 0
        %1020 = vmatpush1.bf16.xpose.msra.mxu0 0
        %1021 = vmatprep.subr.bf16.mxu0 0
        %1022 = vmatpush1.bf16.xpose.msra.mxu0 0
        %1023 = vmatprep.subr.bf16.mxu0 0
        %1024 = vmatpush1.bf16.xpose.msra.mxu0 0
        %1025 = vmatprep.subr.bf16.mxu0 0
        %1026 = vmatpush1.bf16.xpose.msra.mxu0 0
        %1027 = vmatprep.subr.bf16.mxu0 0
        %1028 = vmatpush1.bf16.xpose.msra.mxu0 0
        %1029 = vmatprep.subr.bf16.mxu0 0
        %1030 = vmatpush1.bf16.xpose.msra.mxu0 0
        %1031 = vmatprep.subr.bf16.mxu0 0
        %1032 = vmatpush1.bf16.xpose.msra.mxu0 0
        %1033 = vmatprep.subr.bf16.mxu0 0
        %1034 = vmatpush1.bf16.xpose.msra.mxu0 0
        %1035 = vmatprep.subr.bf16.mxu0 0
        %1036 = vmatpush1.bf16.xpose.msra.mxu0 0
        %1037 = vmatprep.subr.bf16.mxu0 0
        %1038 = vmatpush1.bf16.xpose.msra.mxu0 0
        %1039 = vmatprep.subr.bf16.mxu0 0
        %1040 = vmatpush1.bf16.xpose.msra.mxu0 0
        %1041 = vmatprep.subr.bf16.mxu0 0
        %1042 = vmatpush1.bf16.xpose.msra.mxu0 0
        %1043 = vmatprep.mubr.bf16.mxu0 0
        %1044 = vmatmul.mubr.bf16.gmra.mrb[0].mxu0 %v1006
        %v1045 = vpop.f32.mrb[0].mxu0
        %v1046 = vadd.f32 0.0, %v1045
        %v1047 = vpop.f32.mrb[0].mxu0
        %v1048 = vpop.f32.mrb[0].mxu0
        %v1049 = vpop.f32.mrb[0].mxu0
        %1050 = vdwg.mxu0
        %v1051 = vmul.f32 %v1046, 0.35355338
        %v1052 = vsel %vm770, %v1051, -1e+30
        %v1053 = vsel %vm777, %v1052, -inf
        %1054 = vmax.xlane.f32.xlu0 %v1053
        %v1055 = vpop.xlane.xlu0 %1054
        %v1056 = vsub.f32 %v1052, %v1055
        %v1057 = vmul.f32 %v1056, 1.442695
        %v1058 = vpow.pop %v1057
        %v1059 = vsel %vm777, %v1058, 0.0
        %1060 = vadd.xlane.f32.xlu0 %v1059
        %v1061 = vpop.xlane.xlu0 %1060
        %v1062 = vrcp.pop %v1061
        %v1063 = vmul.f32 %v1058, %v1062
        %v1064 = vpack.c.bf16 %v1063, %v1063
        %1065 = vrot.lane.b32.xlu0 %v773, 48
        %v1066 = vpop.permute.xlu0 %1065
        %v1068 = vsel %vm777, %v1064, 0
        %v1071 = vsel %vm844, %v1066, 0
        %1073 = vmatprep.subr.bf16.mxu0 0
        %1074 = vmatpush1.bf16.msra.mxu0 %v1071
        %1075 = vmatprep.subr.bf16.mxu0 0
        %1076 = vmatpush1.bf16.msra.mxu0 0
        %1077 = vmatprep.subr.bf16.mxu0 0
        %1078 = vmatpush1.bf16.msra.mxu0 0
        %1079 = vmatprep.subr.bf16.mxu0 0
        %1080 = vmatpush1.bf16.msra.mxu0 0
        %1081 = vmatprep.subr.bf16.mxu0 0
        %1082 = vmatpush1.bf16.msra.mxu0 0
        %1083 = vmatprep.subr.bf16.mxu0 0
        %1084 = vmatpush1.bf16.msra.mxu0 0
        %1085 = vmatprep.subr.bf16.mxu0 0
        %1086 = vmatpush1.bf16.msra.mxu0 0
        %1087 = vmatprep.subr.bf16.mxu0 0
        %1088 = vmatpush1.bf16.msra.mxu0 0
        %1089 = vmatprep.subr.bf16.mxu0 0
        %1090 = vmatpush1.bf16.msra.mxu0 0
        %1091 = vmatprep.subr.bf16.mxu0 0
        %1092 = vmatpush1.bf16.msra.mxu0 0
        %1093 = vmatprep.subr.bf16.mxu0 0
        %1094 = vmatpush1.bf16.msra.mxu0 0
        %1095 = vmatprep.subr.bf16.mxu0 0
        %1096 = vmatpush1.bf16.msra.mxu0 0
        %1097 = vmatprep.subr.bf16.mxu0 0
        %1098 = vmatpush1.bf16.msra.mxu0 0
        %1099 = vmatprep.subr.bf16.mxu0 0
        %1100 = vmatpush1.bf16.msra.mxu0 0
        %1101 = vmatprep.subr.bf16.mxu0 0
        %1102 = vmatpush1.bf16.msra.mxu0 0
        %1103 = vmatprep.subr.bf16.mxu0 0
        %1104 = vmatpush1.bf16.msra.mxu0 0
        %1105 = vmatprep.mubr.bf16.mxu0 0
        %1106 = vmatmul.mubr.bf16.gmra.mrb[0].mxu0 %v1068
        %v1107 = vpop.f32.mrb[0].mxu0
        %v1108 = vadd.f32 0.0, %v1107
        %v1109 = vpop.f32.mrb[0].mxu0
        %v1110 = vpop.f32.mrb[0].mxu0
        %v1111 = vpop.f32.mrb[0].mxu0
        %1112 = vdwg.mxu0
        %1113 = vrot.lane.b32.xlu0 %v771, 104
        %v1114 = vpop.permute.xlu0 %1113
        %1115 = vrot.lane.b32.xlu0 %v772, 72
        %v1116 = vpop.permute.xlu0 %1115
        %v1118 = vsel %vm777, %v1114, 0
        %v1121 = vsel %vm777, %v1116, 0
        %1123 = vmatprep.subr.bf16.mxu0 0
        %1124 = vmatpush1.bf16.xpose.msra.mxu0 %v1121
        %1125 = vmatprep.subr.bf16.mxu0 0
        %1126 = vmatpush1.bf16.xpose.msra.mxu0 0
        %1127 = vmatprep.subr.bf16.mxu0 0
        %1128 = vmatpush1.bf16.xpose.msra.mxu0 0
        %1129 = vmatprep.subr.bf16.mxu0 0
        %1130 = vmatpush1.bf16.xpose.msra.mxu0 0
        %1131 = vmatprep.subr.bf16.mxu0 0
        %1132 = vmatpush1.bf16.xpose.msra.mxu0 0
        %1133 = vmatprep.subr.bf16.mxu0 0
        %1134 = vmatpush1.bf16.xpose.msra.mxu0 0
        %1135 = vmatprep.subr.bf16.mxu0 0
        %1136 = vmatpush1.bf16.xpose.msra.mxu0 0
        %1137 = vmatprep.subr.bf16.mxu0 0
        %1138 = vmatpush1.bf16.xpose.msra.mxu0 0
        %1139 = vmatprep.subr.bf16.mxu0 0
        %1140 = vmatpush1.bf16.xpose.msra.mxu0 0
        %1141 = vmatprep.subr.bf16.mxu0 0
        %1142 = vmatpush1.bf16.xpose.msra.mxu0 0
        %1143 = vmatprep.subr.bf16.mxu0 0
        %1144 = vmatpush1.bf16.xpose.msra.mxu0 0
        %1145 = vmatprep.subr.bf16.mxu0 0
        %1146 = vmatpush1.bf16.xpose.msra.mxu0 0
        %1147 = vmatprep.subr.bf16.mxu0 0
        %1148 = vmatpush1.bf16.xpose.msra.mxu0 0
        %1149 = vmatprep.subr.bf16.mxu0 0
        %1150 = vmatpush1.bf16.xpose.msra.mxu0 0
        %1151 = vmatprep.subr.bf16.mxu0 0
        %1152 = vmatpush1.bf16.xpose.msra.mxu0 0
        %1153 = vmatprep.subr.bf16.mxu0 0
        %1154 = vmatpush1.bf16.xpose.msra.mxu0 0
        %1155 = vmatprep.mubr.bf16.mxu0 0
        %1156 = vmatmul.mubr.bf16.gmra.mrb[0].mxu0 %v1118
        %v1157 = vpop.f32.mrb[0].mxu0
        %v1158 = vadd.f32 0.0, %v1157
        %v1159 = vpop.f32.mrb[0].mxu0
        %v1160 = vpop.f32.mrb[0].mxu0
        %v1161 = vpop.f32.mrb[0].mxu0
        %1162 = vdwg.mxu0
        %v1163 = vmul.f32 %v1158, 0.35355338
        %v1164 = vsel %vm770, %v1163, -1e+30
        %v1165 = vsel %vm777, %v1164, -inf
        %1166 = vmax.xlane.f32.xlu0 %v1165
        %v1167 = vpop.xlane.xlu0 %1166
        %v1168 = vsub.f32 %v1164, %v1167
        %v1169 = vmul.f32 %v1168, 1.442695
        %v1170 = vpow.pop %v1169
        %v1171 = vsel %vm777, %v1170, 0.0
        %1172 = vadd.xlane.f32.xlu0 %v1171
        %v1173 = vpop.xlane.xlu0 %1172
        %v1174 = vrcp.pop %v1173
        %v1175 = vmul.f32 %v1170, %v1174
        %v1176 = vpack.c.bf16 %v1175, %v1175
        %1177 = vrot.lane.b32.xlu0 %v773, 40
        %v1178 = vpop.permute.xlu0 %1177
        %v1180 = vsel %vm777, %v1176, 0
        %v1183 = vsel %vm844, %v1178, 0
        %1185 = vmatprep.subr.bf16.mxu0 0
        %1186 = vmatpush1.bf16.msra.mxu0 %v1183
        %1187 = vmatprep.subr.bf16.mxu0 0
        %1188 = vmatpush1.bf16.msra.mxu0 0
        %1189 = vmatprep.subr.bf16.mxu0 0
        %1190 = vmatpush1.bf16.msra.mxu0 0
        %1191 = vmatprep.subr.bf16.mxu0 0
        %1192 = vmatpush1.bf16.msra.mxu0 0
        %1193 = vmatprep.subr.bf16.mxu0 0
        %1194 = vmatpush1.bf16.msra.mxu0 0
        %1195 = vmatprep.subr.bf16.mxu0 0
        %1196 = vmatpush1.bf16.msra.mxu0 0
        %1197 = vmatprep.subr.bf16.mxu0 0
        %1198 = vmatpush1.bf16.msra.mxu0 0
        %1199 = vmatprep.subr.bf16.mxu0 0
        %1200 = vmatpush1.bf16.msra.mxu0 0
        %1201 = vmatprep.subr.bf16.mxu0 0
        %1202 = vmatpush1.bf16.msra.mxu0 0
        %1203 = vmatprep.subr.bf16.mxu0 0
        %1204 = vmatpush1.bf16.msra.mxu0 0
        %1205 = vmatprep.subr.bf16.mxu0 0
        %1206 = vmatpush1.bf16.msra.mxu0 0
        %1207 = vmatprep.subr.bf16.mxu0 0
        %1208 = vmatpush1.bf16.msra.mxu0 0
        %1209 = vmatprep.subr.bf16.mxu0 0
        %1210 = vmatpush1.bf16.msra.mxu0 0
        %1211 = vmatprep.subr.bf16.mxu0 0
        %1212 = vmatpush1.bf16.msra.mxu0 0
        %1213 = vmatprep.subr.bf16.mxu0 0
        %1214 = vmatpush1.bf16.msra.mxu0 0
        %1215 = vmatprep.subr.bf16.mxu0 0
        %1216 = vmatpush1.bf16.msra.mxu0 0
        %1217 = vmatprep.mubr.bf16.mxu0 0
        %1218 = vmatmul.mubr.bf16.gmra.mrb[0].mxu0 %v1180
        %v1219 = vpop.f32.mrb[0].mxu0
        %v1220 = vadd.f32 0.0, %v1219
        %v1221 = vpop.f32.mrb[0].mxu0
        %v1222 = vpop.f32.mrb[0].mxu0
        %v1223 = vpop.f32.mrb[0].mxu0
        %1224 = vdwg.mxu0
        %1226 = vrot.lane.b32.xlu0 %v996, 8
        %v1227 = vpop.permute.xlu0 %1226
        %1230 = vrot.lane.b32.xlu0 %v1108, 16
        %v1231 = vpop.permute.xlu0 %1230
        %1234 = vrot.lane.b32.xlu0 %v1220, 24
        %v1235 = vpop.permute.xlu0 %1234
        %v1237 = vsel %vm777, %v883, %v1227
        %vm1238 = vcmask 130048
        %v1239 = vsel %vm1238, %v1237, %v1231
        %vm1240 = vcmask 195584
        %v1241 = vsel %vm1240, %v1239, %v1235
        %v1242 = vpack.c.bf16 %v1241, %v1241
        %v1243 = vld [vmem:[%s7] sm:$0xf]
        %v1244 = vld [vmem:[%s7 + $0x4] sm:$0xf]
        %v1245 = vld [vmem:[%s7 + $0x8] sm:$0xf]
        %v1246 = vld [vmem:[%s7 + $0xc] sm:$0xf]
        %v1251 = vunpack.c.l.b16 %v1243
        %v1252 = vunpack.c.l.b16 %v1244
        %v1253 = vunpack.c.l.b16 %v1245
        %v1254 = vunpack.c.l.b16 %v1246
        %v1255 = vpack.c.b16 %v1252, %v1251
        %v1256 = vpack.c.b16 %v1254, %v1253
        %v1260 = vsel %vm608, %v1242, 0
        %1262 = vmatprep.subr.bf16.mxu0 0
        %1263 = vmatpush1.bf16.msra.mxu0 %v1255
        %1264 = vmatprep.subr.bf16.mxu0 0
        %1265 = vmatpush1.bf16.msra.mxu0 %v1256
        %1266 = vmatprep.subr.bf16.mxu0 0
        %1267 = vmatpush1.bf16.msra.mxu0 0
        %1268 = vmatprep.subr.bf16.mxu0 0
        %1269 = vmatpush1.bf16.msra.mxu0 0
        %1270 = vmatprep.subr.bf16.mxu0 0
        %1271 = vmatpush1.bf16.msra.mxu0 0
        %1272 = vmatprep.subr.bf16.mxu0 0
        %1273 = vmatpush1.bf16.msra.mxu0 0
        %1274 = vmatprep.subr.bf16.mxu0 0
        %1275 = vmatpush1.bf16.msra.mxu0 0
        %1276 = vmatprep.subr.bf16.mxu0 0
        %1277 = vmatpush1.bf16.msra.mxu0 0
        %1278 = vmatprep.subr.bf16.mxu0 0
        %1279 = vmatpush1.bf16.msra.mxu0 0
        %1280 = vmatprep.subr.bf16.mxu0 0
        %1281 = vmatpush1.bf16.msra.mxu0 0
        %1282 = vmatprep.subr.bf16.mxu0 0
        %1283 = vmatpush1.bf16.msra.mxu0 0
        %1284 = vmatprep.subr.bf16.mxu0 0
        %1285 = vmatpush1.bf16.msra.mxu0 0
        %1286 = vmatprep.subr.bf16.mxu0 0
        %1287 = vmatpush1.bf16.msra.mxu0 0
        %1288 = vmatprep.subr.bf16.mxu0 0
        %1289 = vmatpush1.bf16.msra.mxu0 0
        %1290 = vmatprep.subr.bf16.mxu0 0
        %1291 = vmatpush1.bf16.msra.mxu0 0
        %1292 = vmatprep.subr.bf16.mxu0 0
        %1293 = vmatpush1.bf16.msra.mxu0 0
        %1294 = vmatprep.mubr.bf16.mxu0 0
        %1295 = vmatmul.mubr.bf16.gmra.mrb[0].mxu0 %v1260
        %v1296 = vpop.f32.mrb[0].mxu0
        %v1297 = vadd.f32 0.0, %v1296
        %v1298 = vpop.f32.mrb[0].mxu0
        %v1299 = vpop.f32.mrb[0].mxu0
        %v1300 = vpop.f32.mrb[0].mxu0
        %1301 = vdwg.mxu0
        %v1302 = vadd.f32 %v605, %v1297
        %v1303 = vld [vmem:[%s8] sm:$0x1]
        %v1305 = vlaneseq
        %v1306 = vshrl.u32 %v1305, 7
        %v1307 = vsub.s32 0, %v1306
        %v1308 = vrot.slane %v1303, %v1307
        %v1310 = vadd.f32 %v1302, %v1308
        %v1311 = vld [vmem:[%s9] sm:$0x1]
        %v1312 = vld [vmem:[%s10] sm:$0x1]
        %v1313 = vsel %vm608, %v1310, 0.0
        %1314 = vadd.xlane.f32.xlu0 %v1313
        %v1315 = vpop.xlane.xlu0 %1314
        %v1316 = vmul.f32 %v1315, %v612
        %v1317 = vsub.f32 %v1310, %v1316
        %v1318 = vmul.f32 %v1317, %v1317
        %v1319 = vsel %vm608, %v1318, 0.0
        %1320 = vadd.xlane.f32.xlu0 %v1319
        %v1321 = vpop.xlane.xlu0 %1320
        %v1322 = vmul.f32 %v1321, %v612
        %v1323 = vadd.f32 %v1322, 1e-05
        %v1324 = vrsqrt.pop %v1323
        %v1325 = vmul.f32 %v1317, %v1324
        %v1327 = vlaneseq
        %v1328 = vshrl.u32 %v1327, 7
        %v1329 = vsub.s32 0, %v1328
        %v1330 = vrot.slane %v1311, %v1329
        %v1332 = vmul.f32 %v1325, %v1330
        %v1334 = vlaneseq
        %v1335 = vshrl.u32 %v1334, 7
        %v1336 = vsub.s32 0, %v1335
        %v1337 = vrot.slane %v1312, %v1336
        %v1339 = vadd.f32 %v1332, %v1337
        %v1340 = vpack.c.bf16 %v1339, %v1339
        %vm1341 = vcmask 257024
        %1342 = vst.msk [vmem:[#allocation2] sm:$0xf] %vm1341, %v1340
        %v1343 = vld [vmem:[%s11] sm:$0xff]
        %v1344 = vld [vmem:[%s11 + $0x8] sm:$0xff]
        %v1345 = vld [vmem:[%s11 + $0x10] sm:$0xff]
        %v1346 = vld [vmem:[%s11 + $0x18] sm:$0xff]
        %v1348 = vsel %vm608, %v1339, 0
        %1350 = vmatprep.subr.mxu0 0.0
        %1351 = vmatpush1.msra.mxu0 %v1343
        %1352 = vmatprep.subr.mxu0 0.0
        %1353 = vmatpush1.msra.mxu0 %v1344
        %1354 = vmatprep.subr.mxu0 0.0
        %1355 = vmatpush1.msra.mxu0 %v1345
        %1356 = vmatprep.subr.mxu0 0.0
        %1357 = vmatpush1.msra.mxu0 %v1346
        %1358 = vmatprep.subr.mxu0 0.0
        %1359 = vmatpush1.msra.mxu0 0.0
        %1360 = vmatprep.subr.mxu0 0.0
        %1361 = vmatpush1.msra.mxu0 0.0
        %1362 = vmatprep.subr.mxu0 0.0
        %1363 = vmatpush1.msra.mxu0 0.0
        %1364 = vmatprep.subr.mxu0 0.0
        %1365 = vmatpush1.msra.mxu0 0.0
        %1366 = vmatprep.subr.mxu0 0.0
        %1367 = vmatpush1.msra.mxu0 0.0
        %1368 = vmatprep.subr.mxu0 0.0
        %1369 = vmatpush1.msra.mxu0 0.0
        %1370 = vmatprep.subr.mxu0 0.0
        %1371 = vmatpush1.msra.mxu0 0.0
        %1372 = vmatprep.subr.mxu0 0.0
        %1373 = vmatpush1.msra.mxu0 0.0
        %1374 = vmatprep.subr.mxu0 0.0
        %1375 = vmatpush1.msra.mxu0 0.0
        %1376 = vmatprep.subr.mxu0 0.0
        %1377 = vmatpush1.msra.mxu0 0.0
        %1378 = vmatprep.subr.mxu0 0.0
        %1379 = vmatpush1.msra.mxu0 0.0
        %1380 = vmatprep.subr.mxu0 0.0
        %1381 = vmatpush1.msra.mxu0 0.0
        %1382 = vmatprep.subr.mxu0 0.0
        %1383 = vmatpush1.msra.mxu0 0.0
        %1384 = vmatprep.subr.mxu0 0.0
        %1385 = vmatpush1.msra.mxu0 0.0
        %1386 = vmatprep.subr.mxu0 0.0
        %1387 = vmatpush1.msra.mxu0 0.0
        %1388 = vmatprep.subr.mxu0 0.0
        %1389 = vmatpush1.msra.mxu0 0.0
        %1390 = vmatprep.subr.mxu0 0.0
        %1391 = vmatpush1.msra.mxu0 0.0
        %1392 = vmatprep.subr.mxu0 0.0
        %1393 = vmatpush1.msra.mxu0 0.0
        %1394 = vmatprep.subr.mxu0 0.0
        %1395 = vmatpush1.msra.mxu0 0.0
        %1396 = vmatprep.subr.mxu0 0.0
        %1397 = vmatpush1.msra.mxu0 0.0
        %1398 = vmatprep.subr.mxu0 0.0
        %1399 = vmatpush1.msra.mxu0 0.0
        %1400 = vmatprep.subr.mxu0 0.0
        %1401 = vmatpush1.msra.mxu0 0.0
        %1402 = vmatprep.subr.mxu0 0.0
        %1403 = vmatpush1.msra.mxu0 0.0
        %1404 = vmatprep.subr.mxu0 0.0
        %1405 = vmatpush1.msra.mxu0 0.0
        %1406 = vmatprep.subr.mxu0 0.0
        %1407 = vmatpush1.msra.mxu0 0.0
        %1408 = vmatprep.subr.mxu0 0.0
        %1409 = vmatpush1.msra.mxu0 0.0
        %1410 = vmatprep.subr.mxu0 0.0
        %1411 = vmatpush1.msra.mxu0 0.0
        %1412 = vmatprep.subr.mxu0 0.0
        %1413 = vmatpush1.msra.mxu0 0.0
        %1414 = vmatprep.mubr.f32.mxu0 0.0
        %1415 = vmatmul.mubr.f32.gmra.mrb[0].mxu0 %v1348
        %v1416 = vpop.f32.mrb[0].mxu0
        %v1417 = vadd.f32 0.0, %v1416
        %v1418 = vpop.f32.mrb[0].mxu0
        %1419 = vdwg.mxu0
        %vm1420 = vcmask 31744
        %v1421 = vsel %vm1420, %v1417, -inf
        %1422 = vmax.xlane.f32.xlu0 %v1421
        %v1423 = vpop.xlane.xlu0 %1422
        %v1424 = vsub.f32 %v1417, %v1423
        %v1425 = vmul.f32 %v1424, 1.442695
        %v1426 = vpow.pop %v1425
        %v1427 = vsel %vm1420, %v1426, 0.0
        %1428 = vadd.xlane.f32.xlu0 %v1427
        %v1429 = vpop.xlane.xlu0 %1428
        %v1430 = vrcp.pop %v1429
        %v1431 = vmul.f32 %v1426, %v1430
        %1432 = vst.msk [vmem:[%s599] sm:$0xff] %vm1420, %v1431
        %v1433 = vsel %vm1420, %v1431, -inf
        %1434 = vmax.xlane.f32.xlu0 %v1433
        %v1435 = vpop.xlane.xlu0 %1434
        %vm1436 = vcmp.ge.f32.partialorder %v1431, %v1435
        %v1437 = vsel %vm1436, %v707, 4
        %v1438 = vsel %vm1420, %v1437, 2147483647
        %v1439 = vand.u32 %v1438, 65535
        %v1440 = vshra.s32 %v1438, 16
        %v1441 = vcvt.s32.f32 %v1439
        %v1442 = vcvt.s32.f32 %v1440
        %1443 = vmin.xlane.f32.xlu0 %v1442
        %v1444 = vpop.xlane.xlu0 %1443
        %vm1445 = vcmp.eq.f32.partialorder %v1442, %v1444
        %v1446 = vsel %vm1445, %v1441, inf
        %1447 = vmin.xlane.f32.xlu0 %v1446
        %v1448 = vpop.xlane.xlu0 %1447
        %v1449 = vcvt.f32.s32 %v1448
        %v1450 = vcvt.f32.s32 %v1444
        %v1451 = vshll.u32 %v1450, 16
        %v1452 = vadd.s32 %v1451, %v1449
        %vm1453 = vcmask 7168
        %1454 = vst.msk [vmem:[#allocation3] sm:$0xff] %vm1453, %v1435
        %1455 = vst.msk [vmem:[#allocation4] sm:$0xff] %vm1453, %v1452
        %1456 = vst.msk [vmem:[%s595] sm:$0xff] %vm608, %v1310
      $region84: #{model_forward.3} parent=79 // pred_fallthru
        _
      %v1457 = vld [vmem:[#allocation2] sm:$0xf]
      %v1458 = vld [vmem:[%s581] sm:$0xf]
      %v1459 = vld [vmem:[%s581 + $0x4] sm:$0xf]
      %v1460 = vld [vmem:[%s581 + $0x8] sm:$0xf]
      %v1461 = vld [vmem:[%s581 + $0xc] sm:$0xf]
      %v1466 = vunpack.c.l.b16 %v1458
      %v1467 = vunpack.c.l.b16 %v1459
      %v1468 = vunpack.c.l.b16 %v1460
      %v1469 = vunpack.c.l.b16 %v1461
      %v1470 = vpack.c.b16 %v1467, %v1466
      %v1471 = vpack.c.b16 %v1469, %v1468
      %vm1474 = vcmask 261120
      %v1476 = vsel %vm1474, %v1457, 0
      %1478 = vmatprep.subr.bf16.mxu0 0
      %1479 = vmatpush1.bf16.msra.mxu0 %v1470
      %1480 = vmatprep.subr.bf16.mxu0 0
      %1481 = vmatpush1.bf16.msra.mxu0 %v1471
      %1482 = vmatprep.subr.bf16.mxu0 0
      %1483 = vmatpush1.bf16.msra.mxu0 0
      %1484 = vmatprep.subr.bf16.mxu0 0
      %1485 = vmatpush1.bf16.msra.mxu0 0
      %1486 = vmatprep.subr.bf16.mxu0 0
      %1487 = vmatpush1.bf16.msra.mxu0 0
      %1488 = vmatprep.subr.bf16.mxu0 0
      %1489 = vmatpush1.bf16.msra.mxu0 0
      %1490 = vmatprep.subr.bf16.mxu0 0
      %1491 = vmatpush1.bf16.msra.mxu0 0
      %1492 = vmatprep.subr.bf16.mxu0 0
      %1493 = vmatpush1.bf16.msra.mxu0 0
      %1494 = vmatprep.subr.bf16.mxu0 0
      %1495 = vmatpush1.bf16.msra.mxu0 0
      %1496 = vmatprep.subr.bf16.mxu0 0
      %1497 = vmatpush1.bf16.msra.mxu0 0
      %1498 = vmatprep.subr.bf16.mxu0 0
      %1499 = vmatpush1.bf16.msra.mxu0 0
      %1500 = vmatprep.subr.bf16.mxu0 0
      %1501 = vmatpush1.bf16.msra.mxu0 0
      %1502 = vmatprep.subr.bf16.mxu0 0
      %1503 = vmatpush1.bf16.msra.mxu0 0
      %1504 = vmatprep.subr.bf16.mxu0 0
      %1505 = vmatpush1.bf16.msra.mxu0 0
      %1506 = vmatprep.subr.bf16.mxu0 0
      %1507 = vmatpush1.bf16.msra.mxu0 0
      %1508 = vmatprep.subr.bf16.mxu0 0
      %1509 = vmatpush1.bf16.msra.mxu0 0
      %1510 = vmatprep.mubr.bf16.mxu0 0
      %1511 = vmatmul.mubr.bf16.gmra.mrb[0].mxu0 %v1476
      %v1512 = vpop.f32.mrb[0].mxu0
      %v1513 = vadd.f32 0.0, %v1512
      %v1514 = vpop.f32.mrb[0].mxu0
      %v1515 = vpop.f32.mrb[0].mxu0
      %v1516 = vpop.f32.mrb[0].mxu0
      %1517 = vdwg.mxu0
      %v1518 = vld [vmem:[%s586] sm:$0xf]
      %v1519 = vld [vmem:[%s586 + $0x4] sm:$0xf]
      %v1520 = vld [vmem:[%s586 + $0x8] sm:$0xf]
      %v1521 = vld [vmem:[%s586 + $0xc] sm:$0xf]
      %v1526 = vunpack.c.l.b16 %v1518
      %v1527 = vunpack.c.l.b16 %v1519
      %v1528 = vunpack.c.l.b16 %v1520
      %v1529 = vunpack.c.l.b16 %v1521
      %v1530 = vpack.c.b16 %v1527, %v1526
      %v1531 = vpack.c.b16 %v1529, %v1528
      %1534 = vmatprep.subr.bf16.mxu0 0
      %1535 = vmatpush1.bf16.msra.mxu0 %v1530
      %1536 = vmatprep.subr.bf16.mxu0 0
      %1537 = vmatpush1.bf16.msra.mxu0 %v1531
      %1538 = vmatprep.subr.bf16.mxu0 0
      %1539 = vmatpush1.bf16.msra.mxu0 0
      %1540 = vmatprep.subr.bf16.mxu0 0
      %1541 = vmatpush1.bf16.msra.mxu0 0
      %1542 = vmatprep.subr.bf16.mxu0 0
      %1543 = vmatpush1.bf16.msra.mxu0 0
      %1544 = vmatprep.subr.bf16.mxu0 0
      %1545 = vmatpush1.bf16.msra.mxu0 0
      %1546 = vmatprep.subr.bf16.mxu0 0
      %1547 = vmatpush1.bf16.msra.mxu0 0
      %1548 = vmatprep.subr.bf16.mxu0 0
      %1549 = vmatpush1.bf16.msra.mxu0 0
      %1550 = vmatprep.subr.bf16.mxu0 0
      %1551 = vmatpush1.bf16.msra.mxu0 0
      %1552 = vmatprep.subr.bf16.mxu0 0
      %1553 = vmatpush1.bf16.msra.mxu0 0
      %1554 = vmatprep.subr.bf16.mxu0 0
      %1555 = vmatpush1.bf16.msra.mxu0 0
      %1556 = vmatprep.subr.bf16.mxu0 0
      %1557 = vmatpush1.bf16.msra.mxu0 0
      %1558 = vmatprep.subr.bf16.mxu0 0
      %1559 = vmatpush1.bf16.msra.mxu0 0
      %1560 = vmatprep.subr.bf16.mxu0 0
      %1561 = vmatpush1.bf16.msra.mxu0 0
      %1562 = vmatprep.subr.bf16.mxu0 0
      %1563 = vmatpush1.bf16.msra.mxu0 0
      %1564 = vmatprep.subr.bf16.mxu0 0
      %1565 = vmatpush1.bf16.msra.mxu0 0
      %1566 = vmatprep.mubr.bf16.mxu0 0
      %1567 = vmatmul.mubr.bf16.gmra.mrb[0].mxu0 %v1476
      %v1568 = vpop.f32.mrb[0].mxu0
      %v1569 = vadd.f32 0.0, %v1568
      %v1570 = vpop.f32.mrb[0].mxu0
      %v1571 = vpop.f32.mrb[0].mxu0
      %v1572 = vpop.f32.mrb[0].mxu0
      %1573 = vdwg.mxu0
      %v1574 = vxor.u32 %v1569, 2147483648
      %v1575 = vmul.f32 %v1574, 1.442695
      %v1576 = vpow.pop %v1575
      %v1577 = vadd.f32 %v1576, 1.0
      %v1578 = vrcp.pop %v1577
      %v1579 = vmul.f32 1.0, %v1578
      %v1580 = vmul.f32 %v1569, %v1579
      %v1581 = vmul.f32 %v1513, %v1580
      %v1582 = vpack.c.bf16 %v1581, %v1581
      %v1583 = vld [vmem:[%s591] sm:$0xf]
      %v1584 = vld [vmem:[%s591 + $0x4] sm:$0xf]
      %v1585 = vld [vmem:[%s591 + $0x8] sm:$0xf]
      %v1586 = vld [vmem:[%s591 + $0xc] sm:$0xf]
      %v1587 = vld [vmem:[%s591 + $0x10] sm:$0xf]
      %v1588 = vld [vmem:[%s591 + $0x14] sm:$0xf]
      %v1589 = vld [vmem:[%s591 + $0x18] sm:$0xf]
      %v1590 = vld [vmem:[%s591 + $0x1c] sm:$0xf]
      %v1591 = vld [vmem:[%s591 + $0x20] sm:$0xf]
      %v1592 = vld [vmem:[%s591 + $0x24] sm:$0xf]
      %v1593 = vld [vmem:[%s591 + $0x28] sm:$0xf]
      %v1594 = vld [vmem:[%s591 + $0x2c] sm:$0xf]
      %v1595 = vld [vmem:[%s591 + $0x30] sm:$0xf]
      %v1596 = vld [vmem:[%s591 + $0x34] sm:$0xf]
      %v1597 = vld [vmem:[%s591 + $0x38] sm:$0xf]
      %v1598 = vld [vmem:[%s591 + $0x3c] sm:$0xf]
      %v1615 = vunpack.c.l.b16 %v1583
      %v1616 = vunpack.c.l.b16 %v1584
      %v1617 = vunpack.c.l.b16 %v1585
      %v1618 = vunpack.c.l.b16 %v1586
      %v1619 = vunpack.c.l.b16 %v1587
      %v1620 = vunpack.c.l.b16 %v1588
      %v1621 = vunpack.c.l.b16 %v1589
      %v1622 = vunpack.c.l.b16 %v1590
      %v1623 = vunpack.c.l.b16 %v1591
      %v1624 = vunpack.c.l.b16 %v1592
      %v1625 = vunpack.c.l.b16 %v1593
      %v1626 = vunpack.c.l.b16 %v1594
      %v1627 = vunpack.c.l.b16 %v1595
      %v1628 = vunpack.c.l.b16 %v1596
      %v1629 = vunpack.c.l.b16 %v1597
      %v1630 = vunpack.c.l.b16 %v1598
      %v1631 = vpack.c.b16 %v1616, %v1615
      %v1632 = vpack.c.b16 %v1618, %v1617
      %v1633 = vpack.c.b16 %v1620, %v1619
      %v1634 = vpack.c.b16 %v1622, %v1621
      %v1635 = vpack.c.b16 %v1624, %v1623
      %v1636 = vpack.c.b16 %v1626, %v1625
      %v1637 = vpack.c.b16 %v1628, %v1627
      %v1638 = vpack.c.b16 %v1630, %v1629
      %1647 = vmatprep.subr.bf16.mxu0 0
      %1648 = vmatpush1.bf16.msra.mxu0 %v1631
      %1649 = vmatprep.subr.bf16.mxu0 0
      %1650 = vmatpush1.bf16.msra.mxu0 %v1632
      %1651 = vmatprep.subr.bf16.mxu0 0
      %1652 = vmatpush1.bf16.msra.mxu0 %v1633
      %1653 = vmatprep.subr.bf16.mxu0 0
      %1654 = vmatpush1.bf16.msra.mxu0 %v1634
      %1655 = vmatprep.subr.bf16.mxu0 0
      %1656 = vmatpush1.bf16.msra.mxu0 %v1635
      %1657 = vmatprep.subr.bf16.mxu0 0
      %1658 = vmatpush1.bf16.msra.mxu0 %v1636
      %1659 = vmatprep.subr.bf16.mxu0 0
      %1660 = vmatpush1.bf16.msra.mxu0 %v1637
      %1661 = vmatprep.subr.bf16.mxu0 0
      %1662 = vmatpush1.bf16.msra.mxu0 %v1638
      %1663 = vmatprep.subr.bf16.mxu0 0
      %1664 = vmatpush1.bf16.msra.mxu0 0
      %1665 = vmatprep.subr.bf16.mxu0 0
      %1666 = vmatpush1.bf16.msra.mxu0 0
      %1667 = vmatprep.subr.bf16.mxu0 0
      %1668 = vmatpush1.bf16.msra.mxu0 0
      %1669 = vmatprep.subr.bf16.mxu0 0
      %1670 = vmatpush1.bf16.msra.mxu0 0
      %1671 = vmatprep.subr.bf16.mxu0 0
      %1672 = vmatpush1.bf16.msra.mxu0 0
      %1673 = vmatprep.subr.bf16.mxu0 0
      %1674 = vmatpush1.bf16.msra.mxu0 0
      %1675 = vmatprep.subr.bf16.mxu0 0
      %1676 = vmatpush1.bf16.msra.mxu0 0
      %1677 = vmatprep.subr.bf16.mxu0 0
      %1678 = vmatpush1.bf16.msra.mxu0 0
      %1679 = vmatprep.mubr.bf16.mxu0 0
      %1680 = vmatmul.mubr.bf16.gmra.mrb[0].mxu0 %v1582
      %v1681 = vpop.f32.mrb[0].mxu0
      %v1682 = vadd.f32 0.0, %v1681
      %v1683 = vpop.f32.mrb[0].mxu0
      %v1684 = vpop.f32.mrb[0].mxu0
      %v1685 = vpop.f32.mrb[0].mxu0
      %1686 = vdwg.mxu0
      %v1687 = vld [vmem:[#allocation4] sm:$0xff]
      %v1688 = vstv %s33
      %vm1689 = vcmp.eq.s32.totalorder %v1687, %v1688
      %v1690 = vld [vmem:[#allocation3] sm:$0xff]
      %v1691 = vsel %vm1689, %v1690, 0.0
      %v1692 = vld [vmem:[%s595] sm:$0xff]
      %1694 = vset.pattern.permute.xlu0 0
      %1695 = vperm.xlu0 %1694, %v1691
      %v1696 = vpop.permute.xlu0 %1695
      %v1698 = vmul.f32 %v1696, %v1682
      %v1699 = vadd.f32 %v1692, %v1698
      %1700 = vst.msk [vmem:[%s595] sm:$0xff] %vm1474, %v1699
      %p1701 = scmp.lt.s32.totalorder %s32, 1
      %s1702 = scalar_select %p1701, %s32, 1
      %s1703 = smul.addr %s1702, 8
      %s1704 = scalar_lea.vmem %s15, %s1703
      %p1705 = scmp.lt.s32.totalorder %s32, 1
      %s1706 = scalar_select %p1705, %s32, 1
      %s1707 = smul.addr %s1706, 8
      %s1708 = scalar_lea.vmem %s16, %s1707
      // Predicated region
      $region85: #{model_forward.3} parent=79 // pred_check
        %p1709 = pneg %p393
      $region86: #{model_forward.3} parent=79 // pred_check_branch
        %1711 = sbr.rel (%p1709) target = $region88
      $region87: #{model_forward.3} parent=79 // pred_region
        _
      $region88: #{model_forward.3} parent=79 // pred_fallthru
        _
      // Predicated region
      $region89: #{model_forward.3} parent=79 // pred_check
        %p1712 = pneg %p419
      $region90: #{model_forward.3} parent=79 // pred_check_branch
        %1714 = sbr.rel (%p1712) target = $region92
      $region91: #{model_forward.3} parent=79 // pred_region
        _
      $region92: #{model_forward.3} parent=79 // pred_fallthru
        _
    $region80: #{model_forward.3} parent=5 // pred_fallthru
      _
    %p1715 = scmp.le.s32.totalorder 2, %s23
    // Predicated region
    $region93: #{model_forward.3} parent=5 // pred_check
      %p1716 = pneg %p1715
    $region94: #{model_forward.3} parent=5 // pred_check_branch
      %1718 = sbr.rel (%p1716) target = $region96
    $region95: #{model_forward.3} parent=5 // pred_region
      %s1719 = ssub.s32 %s23, 2
      // Predicated region
      $region97: #{model_forward.3} parent=95 // pred_check
        %p1720 = pneg %p399
      $region98: #{model_forward.3} parent=95 // pred_check_branch
        %1722 = sbr.rel (%p1720) target = $region100
      $region99: #{model_forward.3} parent=95 // pred_region
        %p1723 = scmp.lt.s32.totalorder %s34, 1
        %s1724 = scalar_select %p1723, %s34, 1
        %s1725 = smul.addr %s1724, 8
        %s1726 = scalar_lea.vmem %s15, %s1725
      $region100: #{model_forward.3} parent=95 // pred_fallthru
        _
      // Predicated region
      $region101: #{model_forward.3} parent=95 // pred_check
        %p1727 = pneg %p425
      $region102: #{model_forward.3} parent=95 // pred_check_branch
        %1729 = sbr.rel (%p1727) target = $region104
      $region103: #{model_forward.3} parent=95 // pred_region
        %p1730 = scmp.lt.s32.totalorder %s34, 1
        %s1731 = scalar_select %p1730, %s34, 1
        %s1732 = smul.addr %s1731, 8
        %s1733 = scalar_lea.vmem %s16, %s1732
      $region104: #{model_forward.3} parent=95 // pred_fallthru
        _
    $region96: #{model_forward.3} parent=5 // pred_fallthru
      _
  $region6: #{model_forward.3} parent=0 // loop_footer
    %s27 = sadd.s32 1, %s23
  $region7: #{model_forward.3} parent=0 // loop_footer_branch
    %22 = sbr.rel target = $region3
  $region8: #{model_forward.3} parent=0 // loop_exit
    _

</llo_original>
